<compile_context>
chip_gen: v5e
topology: v5e:2x2
jax: 0.10.0
libtpu: 0.0.40
codegen_flags: <defaults>
</compile_context>

<pallas_src>
import functools

import jax
import jax.numpy as jnp
from jax import lax
from jax.experimental import pallas as pl
from jax.experimental.pallas import tpu as pltpu

KSIZE = 7
PAD = 3  # kernel_size=7 -> padding=3


def _spatial_attention_kernel(w_ref, x_ref, o_ref,
                              sum_acc, max_acc, pc_a, pc_b, *, H, W):
    """Grid = (batch tiles [parallel], channel tiles [arbitrary]).

    w_ref   : SMEM (2, 49) f32      conv weights; row 0 pre-scaled by 1/C
    x_ref   : VMEM (TB, TC, HW)     input block (spatial dims flattened)
    o_ref   : VMEM (TB, 1, HW)      output block
    sum_acc : VMEM (TB, HW+2*PAD)   running channel sum, interior at [PAD:PAD+HW]
    max_acc : VMEM (TB, HW+2*PAD)   running channel max, interior at [PAD:PAD+HW]
    pc_a/b  : VMEM (TB, HW+2*PAD*W) staging buffers for the row (kh) shifts
    """
    HW = H * W
    TB = x_ref.shape[0]
    ci = pl.program_id(1)
    n_c = pl.num_programs(1)

    @pl.when(ci == 0)
    def _init():
        # Only the interiors are ever read unmasked; pad borders are handled
        # by exact masks below (selects), so no full-scratch zeroing needed.
        sum_acc[:, PAD:PAD + HW] = jnp.zeros((TB, HW), jnp.float32)
        max_acc[:, PAD:PAD + HW] = jnp.full((TB, HW), -jnp.inf, jnp.float32)

    # Running channel reduction for this channel tile (every grid step).
    # Sum accumulates in f32; max reduces in the native dtype and only the
    # reduced (TB, HW) plane is upcast (avoids a full f32 copy for bf16 x).
    x_blk = x_ref[...]                                       # (TB, TC, HW)
    sum_acc[:, PAD:PAD + HW] += jnp.sum(x_blk.astype(jnp.float32), axis=1)
    max_acc[:, PAD:PAD + HW] = jnp.maximum(
        max_acc[:, PAD:PAD + HW], jnp.max(x_blk, axis=1).astype(jnp.float32))

    @pl.when(ci == n_c - 1)
    def _conv_and_store():
        flat = lax.broadcasted_iota(jnp.int32, (TB, HW), 1)
        if W & (W - 1) == 0:                                 # W is a power of two
            col = jnp.bitwise_and(flat, W - 1)
        else:
            col = flat % W

        # Stage 1: 7 column(kw)-shifted, boundary-masked planes per pooled
        # input, built once and reused for all 7 row offsets (14 lane shifts
        # total instead of 98).
        planes_a = []
        planes_m = []
        for dwi in range(KSIZE):
            dw = dwi - PAD
            a_s = sum_acc[:, PAD + dw:PAD + dw + HW]
            m_s = max_acc[:, PAD + dw:PAD + dw + HW]
            if dw != 0:
                cmask = (col < W - dw) if dw > 0 else (col >= -dw)
                a_s = jnp.where(cmask, a_s, 0.0)
                m_s = jnp.where(cmask, m_s, 0.0)
            planes_a.append(a_s)
            planes_m.append(m_s)

        # Stage 2: per kernel-row weighted combine (pure VPU MACs), a single
        # row shift per kernel row via a padded staging buffer, and multiple
        # independent accumulators to avoid one long serial FP add chain.
        acc0 = jnp.zeros((TB, HW), jnp.float32)
        acc1 = jnp.zeros((TB, HW), jnp.float32)
        stage = (pc_a, pc_b)
        for dhi in range(KSIZE):
            dh = dhi - PAD
            c0 = jnp.zeros((TB, HW), jnp.float32)
            c1 = jnp.zeros((TB, HW), jnp.float32)
            for dwi in range(KSIZE):
                w_avg = w_ref[0, dhi * KSIZE + dwi]          # already has 1/C folded
                w_max = w_ref[1, dhi * KSIZE + dwi]
                term = w_avg * planes_a[dwi] + w_max * planes_m[dwi]
                if dwi % 2 == 0:
                    c0 = c0 + term
                else:
                    c1 = c1 + term
            comb = c0 + c1
            if dh == 0:
                row_term = comb
            else:
                pc = stage[dhi % 2]                          # alternate buffers
                pc[:, PAD * W:PAD * W + HW] = comb
                shifted = pc[:, (PAD + dh) * W:(PAD + dh) * W + HW]
                rmask = (flat < (H - dh) * W) if dh > 0 else (flat >= (-dh) * W)
                row_term = jnp.where(rmask, shifted, 0.0)
            if dhi % 2 == 0:
                acc0 = acc0 + row_term
            else:
                acc1 = acc1 + row_term

        o_ref[:, 0, :] = jax.nn.sigmoid(acc0 + acc1).astype(o_ref.dtype)


def _pick_batch_tile(n, per_batch_bytes):
    """Batch elements per grid step: big enough blocks, but keep >=2 parallel
    grid steps when possible so v7x's second TensorCore gets work."""
    target = 2 * 1024 * 1024
    tb = max(1, min(n, target // max(per_batch_bytes, 1)))
    while n % tb:
        tb -= 1
    if n >= 2 and n // tb < 2:
        tb = max(1, n // 2)
        while n % tb:
            tb -= 1
    return tb


def _pick_channel_tile(c, per_channel_bytes):
    """Channel tile so a double-buffered input block stays well inside VMEM
    (v7x has only 64 MiB physical). Tile must be a multiple of 8 or == C."""
    max_block_bytes = 4 * 1024 * 1024
    if c * per_channel_bytes <= max_block_bytes:
        return c
    tc = (max_block_bytes // max(per_channel_bytes, 1)) // 8 * 8
    tc = max(8, min(tc, c))
    while tc > 8 and c % tc:
        tc -= 8
    # TODO(synk): for huge C not divisible by 8 this falls back to the full C.
    return tc if c % tc == 0 else c


@jax.jit
def spatial_attention(x, w):
    """x: (N, C, H, W); w: (1, 2, 7, 7) conv weight (no bias)."""
    N, C, H, W = x.shape
    HW = H * W
    itemsize = x.dtype.itemsize

    tb = _pick_batch_tile(N, C * HW * itemsize)
    tc = _pick_channel_tile(C, tb * HW * itemsize)

    # Lane-dense layout: flatten the spatial dims into the last (lane) dim.
    x_flat = x.reshape(N, C, HW)
    # Fold the 1/C of the channel mean into the avg-channel weights.
    w_flat = (w.reshape(2, KSIZE * KSIZE).astype(jnp.float32)
              * jnp.array([[1.0 / C], [1.0]], dtype=jnp.float32))

    # Explicit VMEM budget for the chosen block sizes (double-buffered I/O).
    blk_in = tb * tc * HW * itemsize
    blk_out = tb * HW * itemsize
    scratch_bytes = tb * 4 * (2 * (HW + 2 * PAD) + 2 * (HW + 2 * PAD * W))
    vmem_need = 2 * blk_in + 2 * blk_out + scratch_bytes + (1 << 20)
    vmem_limit = int(min(48 * 2 ** 20, max(32 * 2 ** 20, 2 * vmem_need)))

    kernel = functools.partial(_spatial_attention_kernel, H=H, W=W)
    out_flat = pl.pallas_call(
        kernel,
        out_shape=jax.ShapeDtypeStruct((N, 1, HW), x.dtype),
        grid_spec=pltpu.PrefetchScalarGridSpec(
            num_scalar_prefetch=0,
            grid=(N // tb, C // tc),
            in_specs=[
                # conv weights: small scalar table, keep in SMEM
                pl.BlockSpec(memory_space=pltpu.SMEM),
                pl.BlockSpec((tb, tc, HW), lambda b, c: (b, c, 0)),
            ],
            out_specs=pl.BlockSpec((tb, 1, HW), lambda b, c: (b, 0, 0)),
            scratch_shapes=[
                pltpu.VMEM((tb, HW + 2 * PAD), jnp.float32),      # channel-sum plane
                pltpu.VMEM((tb, HW + 2 * PAD), jnp.float32),      # channel-max plane
                pltpu.VMEM((tb, HW + 2 * PAD * W), jnp.float32),  # row-shift staging A
                pltpu.VMEM((tb, HW + 2 * PAD * W), jnp.float32),  # row-shift staging B
            ],
        ),
        compiler_params=pltpu.CompilerParams(
            dimension_semantics=("parallel", "arbitrary"),
            vmem_limit_bytes=vmem_limit,
        ),
    )(w_flat, x_flat)
    return out_flat.reshape(N, 1, H, W)


def spatial_attention_ref(x, w):
    """Pure-JAX reference (mirrors the PyTorch forward)."""
    avg = jnp.mean(x, axis=1, keepdims=True)
    mx = jnp.max(x, axis=1, keepdims=True)
    cat = jnp.concatenate([avg, mx], axis=1)                 # (N, 2, H, W)
    y = lax.conv_general_dilated(
        cat, w,
        window_strides=(1, 1),
        padding=((PAD, PAD), (PAD, PAD)),
        dimension_numbers=("NCHW", "OIHW", "NCHW"),
    )
    return jax.nn.sigmoid(y)


def _run_case(key, N, C, H, W):
    kx, kw = jax.random.split(key)
    x = jax.random.normal(kx, (N, C, H, W), dtype=jnp.float32)
    # Conv2d(2, 1, 7, bias=False) default init: uniform(-b, b), b = 1/sqrt(fan_in)
    fan_in = 2 * KSIZE * KSIZE
    bound = 1.0 / (fan_in ** 0.5)
    w = jax.random.uniform(kw, (1, 2, KSIZE, KSIZE),
                           minval=-bound, maxval=bound, dtype=jnp.float32)

    out = jax.block_until_ready(spatial_attention(x, w))
    ref = spatial_attention_ref(x, w)
    assert out.shape == (N, 1, H, W), out.shape
    assert jnp.allclose(out, ref, atol=1e-5, rtol=1e-5), (
        float(jnp.max(jnp.abs(out - ref))))


if __name__ == "__main__":
    key = jax.random.PRNGKey(0)
    k1, k2 = jax.random.split(key)

    # Primary small case (matches the module's implied shapes).
    _run_case(k1, N=2, C=4, H=16, W=16)
    # Second case exercising multi-batch blocks (TB=2) and H != W.
    _run_case(k2, N=4, C=8, H=8, W=16)

    print("KERNEL_OK")
</pallas_src>

<mosaic_0001>
module attributes {stable_mosaic.version = 11 : i64} {
  func.func @_spatial_attention_kernel(%arg0: i32, %arg1: i32, %arg2: memref<2x49xf32, #tpu.memory_space<smem>>, %arg3: memref<1x4x256xf32, #tpu.memory_space<vmem>>, %arg4: memref<1x1x256xf32, #tpu.memory_space<vmem>>, %arg5: memref<1x262xf32, #tpu.memory_space<vmem>>, %arg6: memref<1x262xf32, #tpu.memory_space<vmem>>, %arg7: memref<1x352xf32, #tpu.memory_space<vmem>>, %arg8: memref<1x352xf32, #tpu.memory_space<vmem>>) attributes {dimension_semantics = [#tpu.dimension_semantics<parallel>, #tpu.dimension_semantics<arbitrary>], iteration_bounds = array<i64: 2, 1>, scalar_prefetch = 0 : i64, scratch_operands = 4 : i64, tpu.core_type = #tpu.core_type<tc>, window_params = [{transform_indices = @transform_0, window_bounds = array<i64: 2, 49>}, {transform_indices = @transform_1, window_bounds = array<i64: 1, 4, 256>}, {transform_indices = @transform_2, window_bounds = array<i64: 1, 1, 256>}]} {
    %c0_i32 = arith.constant 0 : i32
    %0 = arith.cmpi eq, %arg1, %c0_i32 : i32
    %1 = arith.extui %0 : i1 to i32
    %c0_i32_0 = arith.constant 0 : i32
    %2 = arith.cmpi ne, %1, %c0_i32_0 : i32
    scf.if %2 {
      %cst_13 = arith.constant 0.000000e+00 : f32
      %15 = vector.broadcast %cst_13 : f32 to vector<1x256xf32>
      %c0_14 = arith.constant 0 : index
      %c3_15 = arith.constant 3 : index
      %16 = vector.load %arg5[%c0_14, %c3_15] : memref<1x262xf32, #tpu.memory_space<vmem>>, vector<1x256xf32>
      tpu.vector_store %arg5[%c0_14, %c3_15], %15 {strides = array<i32>} : memref<1x262xf32, #tpu.memory_space<vmem>>, vector<1x256xf32>,
      %cst_16 = arith.constant 0xFF800000 : f32
      %17 = vector.broadcast %cst_16 : f32 to vector<1x256xf32>
      %c0_17 = arith.constant 0 : index
      %c3_18 = arith.constant 3 : index
      %18 = vector.load %arg6[%c0_17, %c3_18] : memref<1x262xf32, #tpu.memory_space<vmem>>, vector<1x256xf32>
      tpu.vector_store %arg6[%c0_17, %c3_18], %17 {strides = array<i32>} : memref<1x262xf32, #tpu.memory_space<vmem>>, vector<1x256xf32>,
    } else {
    }
    %c0 = arith.constant 0 : index
    %c0_1 = arith.constant 0 : index
    %c0_2 = arith.constant 0 : index
    %3 = vector.load %arg3[%c0, %c0_1, %c0_2] : memref<1x4x256xf32, #tpu.memory_space<vmem>>, vector<1x4x256xf32>
    %c0_3 = arith.constant 0 : index
    %c3 = arith.constant 3 : index
    %4 = vector.load %arg5[%c0_3, %c3] : memref<1x262xf32, #tpu.memory_space<vmem>>, vector<1x256xf32>
    %cst = arith.constant dense<0.000000e+00> : vector<1x256xf32>
    %5 = vector.multi_reduction <add>, %3, %cst [1] : vector<1x4x256xf32> to vector<1x256xf32>
    %6 = arith.addf %4, %5 : vector<1x256xf32>
    %c0_4 = arith.constant 0 : index
    %c3_5 = arith.constant 3 : index
    %7 = vector.load %arg5[%c0_4, %c3_5] : memref<1x262xf32, #tpu.memory_space<vmem>>, vector<1x256xf32>
    tpu.vector_store %arg5[%c0_4, %c3_5], %6 {strides = array<i32>} : memref<1x262xf32, #tpu.memory_space<vmem>>, vector<1x256xf32>,
    %c0_6 = arith.constant 0 : index
    %c3_7 = arith.constant 3 : index
    %8 = vector.load %arg6[%c0_6, %c3_7] : memref<1x262xf32, #tpu.memory_space<vmem>>, vector<1x256xf32>
    %cst_8 = arith.constant dense<0xFF800000> : vector<1x256xf32>
    %9 = vector.multi_reduction <maximumf>, %3, %cst_8 [1] : vector<1x4x256xf32> to vector<1x256xf32>
    %10 = arith.maximumf %8, %9 : vector<1x256xf32>
    %c0_9 = arith.constant 0 : index
    %c3_10 = arith.constant 3 : index
    %11 = vector.load %arg6[%c0_9, %c3_10] : memref<1x262xf32, #tpu.memory_space<vmem>>, vector<1x256xf32>
    tpu.vector_store %arg6[%c0_9, %c3_10], %10 {strides = array<i32>} : memref<1x262xf32, #tpu.memory_space<vmem>>, vector<1x256xf32>,
    %c0_i32_11 = arith.constant 0 : i32
    %12 = arith.cmpi eq, %arg1, %c0_i32_11 : i32
    %13 = arith.extui %12 : i1 to i32
    %c0_i32_12 = arith.constant 0 : i32
    %14 = arith.cmpi ne, %13, %c0_i32_12 : i32
    scf.if %14 {
      %15 = tpu.iota {dimensions = array<i32: 1>} : vector<1x256xi32>
      %c15_i32 = arith.constant 15 : i32
      %16 = vector.broadcast %c15_i32 : i32 to vector<1x256xi32>
      %17 = arith.andi %15, %16 : vector<1x256xi32>
      %c0_13 = arith.constant 0 : index
      %c0_14 = arith.constant 0 : index
      %18 = vector.load %arg5[%c0_13, %c0_14] : memref<1x262xf32, #tpu.memory_space<vmem>>, vector<1x256xf32>
      %c0_15 = arith.constant 0 : index
      %c0_16 = arith.constant 0 : index
      %19 = vector.load %arg6[%c0_15, %c0_16] : memref<1x262xf32, #tpu.memory_space<vmem>>, vector<1x256xf32>
      %c3_i32 = arith.constant 3 : i32
      %20 = vector.broadcast %c3_i32 : i32 to vector<1x256xi32>
      %21 = arith.cmpi sge, %17, %20 : vector<1x256xi32>
      %cst_17 = arith.constant 0.000000e+00 : f32
      %22 = vector.broadcast %cst_17 : f32 to vector<1x256xf32>
      %23 = arith.select %21, %18, %22 : vector<1x256xi1>, vector<1x256xf32>
      %cst_18 = arith.constant 0.000000e+00 : f32
      %24 = vector.broadcast %cst_18 : f32 to vector<1x256xf32>
      %25 = arith.select %21, %19, %24 : vector<1x256xi1>, vector<1x256xf32>
      %c0_19 = arith.constant 0 : index
      %c1 = arith.constant 1 : index
      %26 = vector.load %arg5[%c0_19, %c1] : memref<1x262xf32, #tpu.memory_space<vmem>>, vector<1x256xf32>
      %c0_20 = arith.constant 0 : index
      %c1_21 = arith.constant 1 : index
      %27 = vector.load %arg6[%c0_20, %c1_21] : memref<1x262xf32, #tpu.memory_space<vmem>>, vector<1x256xf32>
      %c2_i32 = arith.constant 2 : i32
      %28 = vector.broadcast %c2_i32 : i32 to vector<1x256xi32>
      %29 = arith.cmpi sge, %17, %28 : vector<1x256xi32>
      %cst_22 = arith.constant 0.000000e+00 : f32
      %30 = vector.broadcast %cst_22 : f32 to vector<1x256xf32>
      %31 = arith.select %29, %26, %30 : vector<1x256xi1>, vector<1x256xf32>
      %cst_23 = arith.constant 0.000000e+00 : f32
      %32 = vector.broadcast %cst_23 : f32 to vector<1x256xf32>
      %33 = arith.select %29, %27, %32 : vector<1x256xi1>, vector<1x256xf32>
      %c0_24 = arith.constant 0 : index
      %c2 = arith.constant 2 : index
      %34 = vector.load %arg5[%c0_24, %c2] : memref<1x262xf32, #tpu.memory_space<vmem>>, vector<1x256xf32>
      %c0_25 = arith.constant 0 : index
      %c2_26 = arith.constant 2 : index
      %35 = vector.load %arg6[%c0_25, %c2_26] : memref<1x262xf32, #tpu.memory_space<vmem>>, vector<1x256xf32>
      %c1_i32 = arith.constant 1 : i32
      %36 = vector.broadcast %c1_i32 : i32 to vector<1x256xi32>
      %37 = arith.cmpi sge, %17, %36 : vector<1x256xi32>
      %cst_27 = arith.constant 0.000000e+00 : f32
      %38 = vector.broadcast %cst_27 : f32 to vector<1x256xf32>
      %39 = arith.select %37, %34, %38 : vector<1x256xi1>, vector<1x256xf32>
      %cst_28 = arith.constant 0.000000e+00 : f32
      %40 = vector.broadcast %cst_28 : f32 to vector<1x256xf32>
      %41 = arith.select %37, %35, %40 : vector<1x256xi1>, vector<1x256xf32>
      %c0_29 = arith.constant 0 : index
      %c3_30 = arith.constant 3 : index
      %42 = vector.load %arg5[%c0_29, %c3_30] : memref<1x262xf32, #tpu.memory_space<vmem>>, vector<1x256xf32>
      %c0_31 = arith.constant 0 : index
      %c3_32 = arith.constant 3 : index
      %43 = vector.load %arg6[%c0_31, %c3_32] : memref<1x262xf32, #tpu.memory_space<vmem>>, vector<1x256xf32>
      %c0_33 = arith.constant 0 : index
      %c4 = arith.constant 4 : index
      %44 = vector.load %arg5[%c0_33, %c4] : memref<1x262xf32, #tpu.memory_space<vmem>>, vector<1x256xf32>
      %c0_34 = arith.constant 0 : index
      %c4_35 = arith.constant 4 : index
      %45 = vector.load %arg6[%c0_34, %c4_35] : memref<1x262xf32, #tpu.memory_space<vmem>>, vector<1x256xf32>
      %c15_i32_36 = arith.constant 15 : i32
      %46 = vector.broadcast %c15_i32_36 : i32 to vector<1x256xi32>
      %47 = arith.cmpi slt, %17, %46 : vector<1x256xi32>
      %cst_37 = arith.constant 0.000000e+00 : f32
      %48 = vector.broadcast %cst_37 : f32 to vector<1x256xf32>
      %49 = arith.select %47, %44, %48 : vector<1x256xi1>, vector<1x256xf32>
      %cst_38 = arith.constant 0.000000e+00 : f32
      %50 = vector.broadcast %cst_38 : f32 to vector<1x256xf32>
      %51 = arith.select %47, %45, %50 : vector<1x256xi1>, vector<1x256xf32>
      %c0_39 = arith.constant 0 : index
      %c5 = arith.constant 5 : index
      %52 = vector.load %arg5[%c0_39, %c5] : memref<1x262xf32, #tpu.memory_space<vmem>>, vector<1x256xf32>
      %c0_40 = arith.constant 0 : index
      %c5_41 = arith.constant 5 : index
      %53 = vector.load %arg6[%c0_40, %c5_41] : memref<1x262xf32, #tpu.memory_space<vmem>>, vector<1x256xf32>
      %c14_i32 = arith.constant 14 : i32
      %54 = vector.broadcast %c14_i32 : i32 to vector<1x256xi32>
      %55 = arith.cmpi slt, %17, %54 : vector<1x256xi32>
      %cst_42 = arith.constant 0.000000e+00 : f32
      %56 = vector.broadcast %cst_42 : f32 to vector<1x256xf32>
      %57 = arith.select %55, %52, %56 : vector<1x256xi1>, vector<1x256xf32>
      %cst_43 = arith.constant 0.000000e+00 : f32
      %58 = vector.broadcast %cst_43 : f32 to vector<1x256xf32>
      %59 = arith.select %55, %53, %58 : vector<1x256xi1>, vector<1x256xf32>
      %c0_44 = arith.constant 0 : index
      %c6 = arith.constant 6 : index
      %60 = vector.load %arg5[%c0_44, %c6] : memref<1x262xf32, #tpu.memory_space<vmem>>, vector<1x256xf32>
      %c0_45 = arith.constant 0 : index
      %c6_46 = arith.constant 6 : index
      %61 = vector.load %arg6[%c0_45, %c6_46] : memref<1x262xf32, #tpu.memory_space<vmem>>, vector<1x256xf32>
      %c13_i32 = arith.constant 13 : i32
      %62 = vector.broadcast %c13_i32 : i32 to vector<1x256xi32>
      %63 = arith.cmpi slt, %17, %62 : vector<1x256xi32>
      %cst_47 = arith.constant 0.000000e+00 : f32
      %64 = vector.broadcast %cst_47 : f32 to vector<1x256xf32>
      %65 = arith.select %63, %60, %64 : vector<1x256xi1>, vector<1x256xf32>
      %cst_48 = arith.constant 0.000000e+00 : f32
      %66 = vector.broadcast %cst_48 : f32 to vector<1x256xf32>
      %67 = arith.select %63, %61, %66 : vector<1x256xi1>, vector<1x256xf32>
      %cst_49 = arith.constant 0.000000e+00 : f32
      %68 = vector.broadcast %cst_49 : f32 to vector<1x256xf32>
      %cst_50 = arith.constant 0.000000e+00 : f32
      %69 = vector.broadcast %cst_50 : f32 to vector<1x256xf32>
      %cst_51 = arith.constant 0.000000e+00 : f32
      %70 = vector.broadcast %cst_51 : f32 to vector<1x256xf32>
      %cst_52 = arith.constant 0.000000e+00 : f32
      %71 = vector.broadcast %cst_52 : f32 to vector<1x256xf32>
      %c0_53 = arith.constant 0 : index
      %c0_54 = arith.constant 0 : index
      %72 = memref.load %arg2[%c0_53, %c0_54] : memref<2x49xf32, #tpu.memory_space<smem>>
      %c1_55 = arith.constant 1 : index
      %c0_56 = arith.constant 0 : index
      %73 = memref.load %arg2[%c1_55, %c0_56] : memref<2x49xf32, #tpu.memory_space<smem>>
      %74 = vector.broadcast %72 : f32 to vector<1x256xf32>
      %75 = arith.mulf %74, %23 : vector<1x256xf32>
      %76 = vector.broadcast %73 : f32 to vector<1x256xf32>
      %77 = arith.mulf %76, %25 : vector<1x256xf32>
      %78 = arith.addf %75, %77 : vector<1x256xf32>
      %79 = arith.addf %70, %78 : vector<1x256xf32>
      %c0_57 = arith.constant 0 : index
      %c1_58 = arith.constant 1 : index
      %80 = memref.load %arg2[%c0_57, %c1_58] : memref<2x49xf32, #tpu.memory_space<smem>>
      %c1_59 = arith.constant 1 : index
      %c1_60 = arith.constant 1 : index
      %81 = memref.load %arg2[%c1_59, %c1_60] : memref<2x49xf32, #tpu.memory_space<smem>>
      %82 = vector.broadcast %80 : f32 to vector<1x256xf32>
      %83 = arith.mulf %82, %31 : vector<1x256xf32>
      %84 = vector.broadcast %81 : f32 to vector<1x256xf32>
      %85 = arith.mulf %84, %33 : vector<1x256xf32>
      %86 = arith.addf %83, %85 : vector<1x256xf32>
      %87 = arith.addf %71, %86 : vector<1x256xf32>
      %c0_61 = arith.constant 0 : index
      %c2_62 = arith.constant 2 : index
      %88 = memref.load %arg2[%c0_61, %c2_62] : memref<2x49xf32, #tpu.memory_space<smem>>
      %c1_63 = arith.constant 1 : index
      %c2_64 = arith.constant 2 : index
      %89 = memref.load %arg2[%c1_63, %c2_64] : memref<2x49xf32, #tpu.memory_space<smem>>
      %90 = vector.broadcast %88 : f32 to vector<1x256xf32>
      %91 = arith.mulf %90, %39 : vector<1x256xf32>
      %92 = vector.broadcast %89 : f32 to vector<1x256xf32>
      %93 = arith.mulf %92, %41 : vector<1x256xf32>
      %94 = arith.addf %91, %93 : vector<1x256xf32>
      %95 = arith.addf %79, %94 : vector<1x256xf32>
      %c0_65 = arith.constant 0 : index
      %c3_66 = arith.constant 3 : index
      %96 = memref.load %arg2[%c0_65, %c3_66] : memref<2x49xf32, #tpu.memory_space<smem>>
      %c1_67 = arith.constant 1 : index
      %c3_68 = arith.constant 3 : index
      %97 = memref.load %arg2[%c1_67, %c3_68] : memref<2x49xf32, #tpu.memory_space<smem>>
      %98 = vector.broadcast %96 : f32 to vector<1x256xf32>
      %99 = arith.mulf %98, %42 : vector<1x256xf32>
      %100 = vector.broadcast %97 : f32 to vector<1x256xf32>
      %101 = arith.mulf %100, %43 : vector<1x256xf32>
      %102 = arith.addf %99, %101 : vector<1x256xf32>
      %103 = arith.addf %87, %102 : vector<1x256xf32>
      %c0_69 = arith.constant 0 : index
      %c4_70 = arith.constant 4 : index
      %104 = memref.load %arg2[%c0_69, %c4_70] : memref<2x49xf32, #tpu.memory_space<smem>>
      %c1_71 = arith.constant 1 : index
      %c4_72 = arith.constant 4 : index
      %105 = memref.load %arg2[%c1_71, %c4_72] : memref<2x49xf32, #tpu.memory_space<smem>>
      %106 = vector.broadcast %104 : f32 to vector<1x256xf32>
      %107 = arith.mulf %106, %49 : vector<1x256xf32>
      %108 = vector.broadcast %105 : f32 to vector<1x256xf32>
      %109 = arith.mulf %108, %51 : vector<1x256xf32>
      %110 = arith.addf %107, %109 : vector<1x256xf32>
      %111 = arith.addf %95, %110 : vector<1x256xf32>
      %c0_73 = arith.constant 0 : index
      %c5_74 = arith.constant 5 : index
      %112 = memref.load %arg2[%c0_73, %c5_74] : memref<2x49xf32, #tpu.memory_space<smem>>
      %c1_75 = arith.constant 1 : index
      %c5_76 = arith.constant 5 : index
      %113 = memref.load %arg2[%c1_75, %c5_76] : memref<2x49xf32, #tpu.memory_space<smem>>
      %114 = vector.broadcast %112 : f32 to vector<1x256xf32>
      %115 = arith.mulf %114, %57 : vector<1x256xf32>
      %116 = vector.broadcast %113 : f32 to vector<1x256xf32>
      %117 = arith.mulf %116, %59 : vector<1x256xf32>
      %118 = arith.addf %115, %117 : vector<1x256xf32>
      %119 = arith.addf %103, %118 : vector<1x256xf32>
      %c0_77 = arith.constant 0 : index
      %c6_78 = arith.constant 6 : index
      %120 = memref.load %arg2[%c0_77, %c6_78] : memref<2x49xf32, #tpu.memory_space<smem>>
      %c1_79 = arith.constant 1 : index
      %c6_80 = arith.constant 6 : index
      %121 = memref.load %arg2[%c1_79, %c6_80] : memref<2x49xf32, #tpu.memory_space<smem>>
      %122 = vector.broadcast %120 : f32 to vector<1x256xf32>
      %123 = arith.mulf %122, %65 : vector<1x256xf32>
      %124 = vector.broadcast %121 : f32 to vector<1x256xf32>
      %125 = arith.mulf %124, %67 : vector<1x256xf32>
      %126 = arith.addf %123, %125 : vector<1x256xf32>
      %127 = arith.addf %111, %126 : vector<1x256xf32>
      %128 = arith.addf %127, %119 : vector<1x256xf32>
      %c0_81 = arith.constant 0 : index
      %c48 = arith.constant 48 : index
      %129 = vector.load %arg7[%c0_81, %c48] : memref<1x352xf32, #tpu.memory_space<vmem>>, vector<1x256xf32>
      tpu.vector_store %arg7[%c0_81, %c48], %128 {strides = array<i32>} : memref<1x352xf32, #tpu.memory_space<vmem>>, vector<1x256xf32>,
      %c0_82 = arith.constant 0 : index
      %c0_83 = arith.constant 0 : index
      %130 = vector.load %arg7[%c0_82, %c0_83] : memref<1x352xf32, #tpu.memory_space<vmem>>, vector<1x256xf32>
      %c48_i32 = arith.constant 48 : i32
      %131 = vector.broadcast %c48_i32 : i32 to vector<1x256xi32>
      %132 = arith.cmpi sge, %15, %131 : vector<1x256xi32>
      %cst_84 = arith.constant 0.000000e+00 : f32
      %133 = vector.broadcast %cst_84 : f32 to vector<1x256xf32>
      %134 = arith.select %132, %130, %133 : vector<1x256xi1>, vector<1x256xf32>
      %135 = arith.addf %68, %134 : vector<1x256xf32>
      %cst_85 = arith.constant 0.000000e+00 : f32
      %136 = vector.broadcast %cst_85 : f32 to vector<1x256xf32>
      %cst_86 = arith.constant 0.000000e+00 : f32
      %137 = vector.broadcast %cst_86 : f32 to vector<1x256xf32>
      %c0_87 = arith.constant 0 : index
      %c7 = arith.constant 7 : index
      %138 = memref.load %arg2[%c0_87, %c7] : memref<2x49xf32, #tpu.memory_space<smem>>
      %c1_88 = arith.constant 1 : index
      %c7_89 = arith.constant 7 : index
      %139 = memref.load %arg2[%c1_88, %c7_89] : memref<2x49xf32, #tpu.memory_space<smem>>
      %140 = vector.broadcast %138 : f32 to vector<1x256xf32>
      %141 = arith.mulf %140, %23 : vector<1x256xf32>
      %142 = vector.broadcast %139 : f32 to vector<1x256xf32>
      %143 = arith.mulf %142, %25 : vector<1x256xf32>
      %144 = arith.addf %141, %143 : vector<1x256xf32>
      %145 = arith.addf %136, %144 : vector<1x256xf32>
      %c0_90 = arith.constant 0 : index
      %c8 = arith.constant 8 : index
      %146 = memref.load %arg2[%c0_90, %c8] : memref<2x49xf32, #tpu.memory_space<smem>>
      %c1_91 = arith.constant 1 : index
      %c8_92 = arith.constant 8 : index
      %147 = memref.load %arg2[%c1_91, %c8_92] : memref<2x49xf32, #tpu.memory_space<smem>>
      %148 = vector.broadcast %146 : f32 to vector<1x256xf32>
      %149 = arith.mulf %148, %31 : vector<1x256xf32>
      %150 = vector.broadcast %147 : f32 to vector<1x256xf32>
      %151 = arith.mulf %150, %33 : vector<1x256xf32>
      %152 = arith.addf %149, %151 : vector<1x256xf32>
      %153 = arith.addf %137, %152 : vector<1x256xf32>
      %c0_93 = arith.constant 0 : index
      %c9 = arith.constant 9 : index
      %154 = memref.load %arg2[%c0_93, %c9] : memref<2x49xf32, #tpu.memory_space<smem>>
      %c1_94 = arith.constant 1 : index
      %c9_95 = arith.constant 9 : index
      %155 = memref.load %arg2[%c1_94, %c9_95] : memref<2x49xf32, #tpu.memory_space<smem>>
      %156 = vector.broadcast %154 : f32 to vector<1x256xf32>
      %157 = arith.mulf %156, %39 : vector<1x256xf32>
      %158 = vector.broadcast %155 : f32 to vector<1x256xf32>
      %159 = arith.mulf %158, %41 : vector<1x256xf32>
      %160 = arith.addf %157, %159 : vector<1x256xf32>
      %161 = arith.addf %145, %160 : vector<1x256xf32>
      %c0_96 = arith.constant 0 : index
      %c10 = arith.constant 10 : index
      %162 = memref.load %arg2[%c0_96, %c10] : memref<2x49xf32, #tpu.memory_space<smem>>
      %c1_97 = arith.constant 1 : index
      %c10_98 = arith.constant 10 : index
      %163 = memref.load %arg2[%c1_97, %c10_98] : memref<2x49xf32, #tpu.memory_space<smem>>
      %164 = vector.broadcast %162 : f32 to vector<1x256xf32>
      %165 = arith.mulf %164, %42 : vector<1x256xf32>
      %166 = vector.broadcast %163 : f32 to vector<1x256xf32>
      %167 = arith.mulf %166, %43 : vector<1x256xf32>
      %168 = arith.addf %165, %167 : vector<1x256xf32>
      %169 = arith.addf %153, %168 : vector<1x256xf32>
      %c0_99 = arith.constant 0 : index
      %c11 = arith.constant 11 : index
      %170 = memref.load %arg2[%c0_99, %c11] : memref<2x49xf32, #tpu.memory_space<smem>>
      %c1_100 = arith.constant 1 : index
      %c11_101 = arith.constant 11 : index
      %171 = memref.load %arg2[%c1_100, %c11_101] : memref<2x49xf32, #tpu.memory_space<smem>>
      %172 = vector.broadcast %170 : f32 to vector<1x256xf32>
      %173 = arith.mulf %172, %49 : vector<1x256xf32>
      %174 = vector.broadcast %171 : f32 to vector<1x256xf32>
      %175 = arith.mulf %174, %51 : vector<1x256xf32>
      %176 = arith.addf %173, %175 : vector<1x256xf32>
      %177 = arith.addf %161, %176 : vector<1x256xf32>
      %c0_102 = arith.constant 0 : index
      %c12 = arith.constant 12 : index
      %178 = memref.load %arg2[%c0_102, %c12] : memref<2x49xf32, #tpu.memory_space<smem>>
      %c1_103 = arith.constant 1 : index
      %c12_104 = arith.constant 12 : index
      %179 = memref.load %arg2[%c1_103, %c12_104] : memref<2x49xf32, #tpu.memory_space<smem>>
      %180 = vector.broadcast %178 : f32 to vector<1x256xf32>
      %181 = arith.mulf %180, %57 : vector<1x256xf32>
      %182 = vector.broadcast %179 : f32 to vector<1x256xf32>
      %183 = arith.mulf %182, %59 : vector<1x256xf32>
      %184 = arith.addf %181, %183 : vector<1x256xf32>
      %185 = arith.addf %169, %184 : vector<1x256xf32>
      %c0_105 = arith.constant 0 : index
      %c13 = arith.constant 13 : index
      %186 = memref.load %arg2[%c0_105, %c13] : memref<2x49xf32, #tpu.memory_space<smem>>
      %c1_106 = arith.constant 1 : index
      %c13_107 = arith.constant 13 : index
      %187 = memref.load %arg2[%c1_106, %c13_107] : memref<2x49xf32, #tpu.memory_space<smem>>
      %188 = vector.broadcast %186 : f32 to vector<1x256xf32>
      %189 = arith.mulf %188, %65 : vector<1x256xf32>
      %190 = vector.broadcast %187 : f32 to vector<1x256xf32>
      %191 = arith.mulf %190, %67 : vector<1x256xf32>
      %192 = arith.addf %189, %191 : vector<1x256xf32>
      %193 = arith.addf %177, %192 : vector<1x256xf32>
      %194 = arith.addf %193, %185 : vector<1x256xf32>
      %c0_108 = arith.constant 0 : index
      %c48_109 = arith.constant 48 : index
      %195 = vector.load %arg8[%c0_108, %c48_109] : memref<1x352xf32, #tpu.memory_space<vmem>>, vector<1x256xf32>
      tpu.vector_store %arg8[%c0_108, %c48_109], %194 {strides = array<i32>} : memref<1x352xf32, #tpu.memory_space<vmem>>, vector<1x256xf32>,
      %c0_110 = arith.constant 0 : index
      %c16 = arith.constant 16 : index
      %196 = vector.load %arg8[%c0_110, %c16] : memref<1x352xf32, #tpu.memory_space<vmem>>, vector<1x256xf32>
      %c32_i32 = arith.constant 32 : i32
      %197 = vector.broadcast %c32_i32 : i32 to vector<1x256xi32>
      %198 = arith.cmpi sge, %15, %197 : vector<1x256xi32>
      %cst_111 = arith.constant 0.000000e+00 : f32
      %199 = vector.broadcast %cst_111 : f32 to vector<1x256xf32>
      %200 = arith.select %198, %196, %199 : vector<1x256xi1>, vector<1x256xf32>
      %201 = arith.addf %69, %200 : vector<1x256xf32>
      %cst_112 = arith.constant 0.000000e+00 : f32
      %202 = vector.broadcast %cst_112 : f32 to vector<1x256xf32>
      %cst_113 = arith.constant 0.000000e+00 : f32
      %203 = vector.broadcast %cst_113 : f32 to vector<1x256xf32>
      %c0_114 = arith.constant 0 : index
      %c14 = arith.constant 14 : index
      %204 = memref.load %arg2[%c0_114, %c14] : memref<2x49xf32, #tpu.memory_space<smem>>
      %c1_115 = arith.constant 1 : index
      %c14_116 = arith.constant 14 : index
      %205 = memref.load %arg2[%c1_115, %c14_116] : memref<2x49xf32, #tpu.memory_space<smem>>
      %206 = vector.broadcast %204 : f32 to vector<1x256xf32>
      %207 = arith.mulf %206, %23 : vector<1x256xf32>
      %208 = vector.broadcast %205 : f32 to vector<1x256xf32>
      %209 = arith.mulf %208, %25 : vector<1x256xf32>
      %210 = arith.addf %207, %209 : vector<1x256xf32>
      %211 = arith.addf %202, %210 : vector<1x256xf32>
      %c0_117 = arith.constant 0 : index
      %c15 = arith.constant 15 : index
      %212 = memref.load %arg2[%c0_117, %c15] : memref<2x49xf32, #tpu.memory_space<smem>>
      %c1_118 = arith.constant 1 : index
      %c15_119 = arith.constant 15 : index
      %213 = memref.load %arg2[%c1_118, %c15_119] : memref<2x49xf32, #tpu.memory_space<smem>>
      %214 = vector.broadcast %212 : f32 to vector<1x256xf32>
      %215 = arith.mulf %214, %31 : vector<1x256xf32>
      %216 = vector.broadcast %213 : f32 to vector<1x256xf32>
      %217 = arith.mulf %216, %33 : vector<1x256xf32>
      %218 = arith.addf %215, %217 : vector<1x256xf32>
      %219 = arith.addf %203, %218 : vector<1x256xf32>
      %c0_120 = arith.constant 0 : index
      %c16_121 = arith.constant 16 : index
      %220 = memref.load %arg2[%c0_120, %c16_121] : memref<2x49xf32, #tpu.memory_space<smem>>
      %c1_122 = arith.constant 1 : index
      %c16_123 = arith.constant 16 : index
      %221 = memref.load %arg2[%c1_122, %c16_123] : memref<2x49xf32, #tpu.memory_space<smem>>
      %222 = vector.broadcast %220 : f32 to vector<1x256xf32>
      %223 = arith.mulf %222, %39 : vector<1x256xf32>
      %224 = vector.broadcast %221 : f32 to vector<1x256xf32>
      %225 = arith.mulf %224, %41 : vector<1x256xf32>
      %226 = arith.addf %223, %225 : vector<1x256xf32>
      %227 = arith.addf %211, %226 : vector<1x256xf32>
      %c0_124 = arith.constant 0 : index
      %c17 = arith.constant 17 : index
      %228 = memref.load %arg2[%c0_124, %c17] : memref<2x49xf32, #tpu.memory_space<smem>>
      %c1_125 = arith.constant 1 : index
      %c17_126 = arith.constant 17 : index
      %229 = memref.load %arg2[%c1_125, %c17_126] : memref<2x49xf32, #tpu.memory_space<smem>>
      %230 = vector.broadcast %228 : f32 to vector<1x256xf32>
      %231 = arith.mulf %230, %42 : vector<1x256xf32>
      %232 = vector.broadcast %229 : f32 to vector<1x256xf32>
      %233 = arith.mulf %232, %43 : vector<1x256xf32>
      %234 = arith.addf %231, %233 : vector<1x256xf32>
      %235 = arith.addf %219, %234 : vector<1x256xf32>
      %c0_127 = arith.constant 0 : index
      %c18 = arith.constant 18 : index
      %236 = memref.load %arg2[%c0_127, %c18] : memref<2x49xf32, #tpu.memory_space<smem>>
      %c1_128 = arith.constant 1 : index
      %c18_129 = arith.constant 18 : index
      %237 = memref.load %arg2[%c1_128, %c18_129] : memref<2x49xf32, #tpu.memory_space<smem>>
      %238 = vector.broadcast %236 : f32 to vector<1x256xf32>
      %239 = arith.mulf %238, %49 : vector<1x256xf32>
      %240 = vector.broadcast %237 : f32 to vector<1x256xf32>
      %241 = arith.mulf %240, %51 : vector<1x256xf32>
      %242 = arith.addf %239, %241 : vector<1x256xf32>
      %243 = arith.addf %227, %242 : vector<1x256xf32>
      %c0_130 = arith.constant 0 : index
      %c19 = arith.constant 19 : index
      %244 = memref.load %arg2[%c0_130, %c19] : memref<2x49xf32, #tpu.memory_space<smem>>
      %c1_131 = arith.constant 1 : index
      %c19_132 = arith.constant 19 : index
      %245 = memref.load %arg2[%c1_131, %c19_132] : memref<2x49xf32, #tpu.memory_space<smem>>
      %246 = vector.broadcast %244 : f32 to vector<1x256xf32>
      %247 = arith.mulf %246, %57 : vector<1x256xf32>
      %248 = vector.broadcast %245 : f32 to vector<1x256xf32>
      %249 = arith.mulf %248, %59 : vector<1x256xf32>
      %250 = arith.addf %247, %249 : vector<1x256xf32>
      %251 = arith.addf %235, %250 : vector<1x256xf32>
      %c0_133 = arith.constant 0 : index
      %c20 = arith.constant 20 : index
      %252 = memref.load %arg2[%c0_133, %c20] : memref<2x49xf32, #tpu.memory_space<smem>>
      %c1_134 = arith.constant 1 : index
      %c20_135 = arith.constant 20 : index
      %253 = memref.load %arg2[%c1_134, %c20_135] : memref<2x49xf32, #tpu.memory_space<smem>>
      %254 = vector.broadcast %252 : f32 to vector<1x256xf32>
      %255 = arith.mulf %254, %65 : vector<1x256xf32>
      %256 = vector.broadcast %253 : f32 to vector<1x256xf32>
      %257 = arith.mulf %256, %67 : vector<1x256xf32>
      %258 = arith.addf %255, %257 : vector<1x256xf32>
      %259 = arith.addf %243, %258 : vector<1x256xf32>
      %260 = arith.addf %259, %251 : vector<1x256xf32>
      %c0_136 = arith.constant 0 : index
      %c48_137 = arith.constant 48 : index
      %261 = vector.load %arg7[%c0_136, %c48_137] : memref<1x352xf32, #tpu.memory_space<vmem>>, vector<1x256xf32>
      tpu.vector_store %arg7[%c0_136, %c48_137], %260 {strides = array<i32>} : memref<1x352xf32, #tpu.memory_space<vmem>>, vector<1x256xf32>,
      %c0_138 = arith.constant 0 : index
      %c32 = arith.constant 32 : index
      %262 = vector.load %arg7[%c0_138, %c32] : memref<1x352xf32, #tpu.memory_space<vmem>>, vector<1x256xf32>
      %c16_i32 = arith.constant 16 : i32
      %263 = vector.broadcast %c16_i32 : i32 to vector<1x256xi32>
      %264 = arith.cmpi sge, %15, %263 : vector<1x256xi32>
      %cst_139 = arith.constant 0.000000e+00 : f32
      %265 = vector.broadcast %cst_139 : f32 to vector<1x256xf32>
      %266 = arith.select %264, %262, %265 : vector<1x256xi1>, vector<1x256xf32>
      %267 = arith.addf %135, %266 : vector<1x256xf32>
      %cst_140 = arith.constant 0.000000e+00 : f32
      %268 = vector.broadcast %cst_140 : f32 to vector<1x256xf32>
      %cst_141 = arith.constant 0.000000e+00 : f32
      %269 = vector.broadcast %cst_141 : f32 to vector<1x256xf32>
      %c0_142 = arith.constant 0 : index
      %c21 = arith.constant 21 : index
      %270 = memref.load %arg2[%c0_142, %c21] : memref<2x49xf32, #tpu.memory_space<smem>>
      %c1_143 = arith.constant 1 : index
      %c21_144 = arith.constant 21 : index
      %271 = memref.load %arg2[%c1_143, %c21_144] : memref<2x49xf32, #tpu.memory_space<smem>>
      %272 = vector.broadcast %270 : f32 to vector<1x256xf32>
      %273 = arith.mulf %272, %23 : vector<1x256xf32>
      %274 = vector.broadcast %271 : f32 to vector<1x256xf32>
      %275 = arith.mulf %274, %25 : vector<1x256xf32>
      %276 = arith.addf %273, %275 : vector<1x256xf32>
      %277 = arith.addf %268, %276 : vector<1x256xf32>
      %c0_145 = arith.constant 0 : index
      %c22 = arith.constant 22 : index
      %278 = memref.load %arg2[%c0_145, %c22] : memref<2x49xf32, #tpu.memory_space<smem>>
      %c1_146 = arith.constant 1 : index
      %c22_147 = arith.constant 22 : index
      %279 = memref.load %arg2[%c1_146, %c22_147] : memref<2x49xf32, #tpu.memory_space<smem>>
      %280 = vector.broadcast %278 : f32 to vector<1x256xf32>
      %281 = arith.mulf %280, %31 : vector<1x256xf32>
      %282 = vector.broadcast %279 : f32 to vector<1x256xf32>
      %283 = arith.mulf %282, %33 : vector<1x256xf32>
      %284 = arith.addf %281, %283 : vector<1x256xf32>
      %285 = arith.addf %269, %284 : vector<1x256xf32>
      %c0_148 = arith.constant 0 : index
      %c23 = arith.constant 23 : index
      %286 = memref.load %arg2[%c0_148, %c23] : memref<2x49xf32, #tpu.memory_space<smem>>
      %c1_149 = arith.constant 1 : index
      %c23_150 = arith.constant 23 : index
      %287 = memref.load %arg2[%c1_149, %c23_150] : memref<2x49xf32, #tpu.memory_space<smem>>
      %288 = vector.broadcast %286 : f32 to vector<1x256xf32>
      %289 = arith.mulf %288, %39 : vector<1x256xf32>
      %290 = vector.broadcast %287 : f32 to vector<1x256xf32>
      %291 = arith.mulf %290, %41 : vector<1x256xf32>
      %292 = arith.addf %289, %291 : vector<1x256xf32>
      %293 = arith.addf %277, %292 : vector<1x256xf32>
      %c0_151 = arith.constant 0 : index
      %c24 = arith.constant 24 : index
      %294 = memref.load %arg2[%c0_151, %c24] : memref<2x49xf32, #tpu.memory_space<smem>>
      %c1_152 = arith.constant 1 : index
      %c24_153 = arith.constant 24 : index
      %295 = memref.load %arg2[%c1_152, %c24_153] : memref<2x49xf32, #tpu.memory_space<smem>>
      %296 = vector.broadcast %294 : f32 to vector<1x256xf32>
      %297 = arith.mulf %296, %42 : vector<1x256xf32>
      %298 = vector.broadcast %295 : f32 to vector<1x256xf32>
      %299 = arith.mulf %298, %43 : vector<1x256xf32>
      %300 = arith.addf %297, %299 : vector<1x256xf32>
      %301 = arith.addf %285, %300 : vector<1x256xf32>
      %c0_154 = arith.constant 0 : index
      %c25 = arith.constant 25 : index
      %302 = memref.load %arg2[%c0_154, %c25] : memref<2x49xf32, #tpu.memory_space<smem>>
      %c1_155 = arith.constant 1 : index
      %c25_156 = arith.constant 25 : index
      %303 = memref.load %arg2[%c1_155, %c25_156] : memref<2x49xf32, #tpu.memory_space<smem>>
      %304 = vector.broadcast %302 : f32 to vector<1x256xf32>
      %305 = arith.mulf %304, %49 : vector<1x256xf32>
      %306 = vector.broadcast %303 : f32 to vector<1x256xf32>
      %307 = arith.mulf %306, %51 : vector<1x256xf32>
      %308 = arith.addf %305, %307 : vector<1x256xf32>
      %309 = arith.addf %293, %308 : vector<1x256xf32>
      %c0_157 = arith.constant 0 : index
      %c26 = arith.constant 26 : index
      %310 = memref.load %arg2[%c0_157, %c26] : memref<2x49xf32, #tpu.memory_space<smem>>
      %c1_158 = arith.constant 1 : index
      %c26_159 = arith.constant 26 : index
      %311 = memref.load %arg2[%c1_158, %c26_159] : memref<2x49xf32, #tpu.memory_space<smem>>
      %312 = vector.broadcast %310 : f32 to vector<1x256xf32>
      %313 = arith.mulf %312, %57 : vector<1x256xf32>
      %314 = vector.broadcast %311 : f32 to vector<1x256xf32>
      %315 = arith.mulf %314, %59 : vector<1x256xf32>
      %316 = arith.addf %313, %315 : vector<1x256xf32>
      %317 = arith.addf %301, %316 : vector<1x256xf32>
      %c0_160 = arith.constant 0 : index
      %c27 = arith.constant 27 : index
      %318 = memref.load %arg2[%c0_160, %c27] : memref<2x49xf32, #tpu.memory_space<smem>>
      %c1_161 = arith.constant 1 : index
      %c27_162 = arith.constant 27 : index
      %319 = memref.load %arg2[%c1_161, %c27_162] : memref<2x49xf32, #tpu.memory_space<smem>>
      %320 = vector.broadcast %318 : f32 to vector<1x256xf32>
      %321 = arith.mulf %320, %65 : vector<1x256xf32>
      %322 = vector.broadcast %319 : f32 to vector<1x256xf32>
      %323 = arith.mulf %322, %67 : vector<1x256xf32>
      %324 = arith.addf %321, %323 : vector<1x256xf32>
      %325 = arith.addf %309, %324 : vector<1x256xf32>
      %326 = arith.addf %325, %317 : vector<1x256xf32>
      %327 = arith.addf %201, %326 : vector<1x256xf32>
      %cst_163 = arith.constant 0.000000e+00 : f32
      %328 = vector.broadcast %cst_163 : f32 to vector<1x256xf32>
      %cst_164 = arith.constant 0.000000e+00 : f32
      %329 = vector.broadcast %cst_164 : f32 to vector<1x256xf32>
      %c0_165 = arith.constant 0 : index
      %c28 = arith.constant 28 : index
      %330 = memref.load %arg2[%c0_165, %c28] : memref<2x49xf32, #tpu.memory_space<smem>>
      %c1_166 = arith.constant 1 : index
      %c28_167 = arith.constant 28 : index
      %331 = memref.load %arg2[%c1_166, %c28_167] : memref<2x49xf32, #tpu.memory_space<smem>>
      %332 = vector.broadcast %330 : f32 to vector<1x256xf32>
      %333 = arith.mulf %332, %23 : vector<1x256xf32>
      %334 = vector.broadcast %331 : f32 to vector<1x256xf32>
      %335 = arith.mulf %334, %25 : vector<1x256xf32>
      %336 = arith.addf %333, %335 : vector<1x256xf32>
      %337 = arith.addf %328, %336 : vector<1x256xf32>
      %c0_168 = arith.constant 0 : index
      %c29 = arith.constant 29 : index
      %338 = memref.load %arg2[%c0_168, %c29] : memref<2x49xf32, #tpu.memory_space<smem>>
      %c1_169 = arith.constant 1 : index
      %c29_170 = arith.constant 29 : index
      %339 = memref.load %arg2[%c1_169, %c29_170] : memref<2x49xf32, #tpu.memory_space<smem>>
      %340 = vector.broadcast %338 : f32 to vector<1x256xf32>
      %341 = arith.mulf %340, %31 : vector<1x256xf32>
      %342 = vector.broadcast %339 : f32 to vector<1x256xf32>
      %343 = arith.mulf %342, %33 : vector<1x256xf32>
      %344 = arith.addf %341, %343 : vector<1x256xf32>
      %345 = arith.addf %329, %344 : vector<1x256xf32>
      %c0_171 = arith.constant 0 : index
      %c30 = arith.constant 30 : index
      %346 = memref.load %arg2[%c0_171, %c30] : memref<2x49xf32, #tpu.memory_space<smem>>
      %c1_172 = arith.constant 1 : index
      %c30_173 = arith.constant 30 : index
      %347 = memref.load %arg2[%c1_172, %c30_173] : memref<2x49xf32, #tpu.memory_space<smem>>
      %348 = vector.broadcast %346 : f32 to vector<1x256xf32>
      %349 = arith.mulf %348, %39 : vector<1x256xf32>
      %350 = vector.broadcast %347 : f32 to vector<1x256xf32>
      %351 = arith.mulf %350, %41 : vector<1x256xf32>
      %352 = arith.addf %349, %351 : vector<1x256xf32>
      %353 = arith.addf %337, %352 : vector<1x256xf32>
      %c0_174 = arith.constant 0 : index
      %c31 = arith.constant 31 : index
      %354 = memref.load %arg2[%c0_174, %c31] : memref<2x49xf32, #tpu.memory_space<smem>>
      %c1_175 = arith.constant 1 : index
      %c31_176 = arith.constant 31 : index
      %355 = memref.load %arg2[%c1_175, %c31_176] : memref<2x49xf32, #tpu.memory_space<smem>>
      %356 = vector.broadcast %354 : f32 to vector<1x256xf32>
      %357 = arith.mulf %356, %42 : vector<1x256xf32>
      %358 = vector.broadcast %355 : f32 to vector<1x256xf32>
      %359 = arith.mulf %358, %43 : vector<1x256xf32>
      %360 = arith.addf %357, %359 : vector<1x256xf32>
      %361 = arith.addf %345, %360 : vector<1x256xf32>
      %c0_177 = arith.constant 0 : index
      %c32_178 = arith.constant 32 : index
      %362 = memref.load %arg2[%c0_177, %c32_178] : memref<2x49xf32, #tpu.memory_space<smem>>
      %c1_179 = arith.constant 1 : index
      %c32_180 = arith.constant 32 : index
      %363 = memref.load %arg2[%c1_179, %c32_180] : memref<2x49xf32, #tpu.memory_space<smem>>
      %364 = vector.broadcast %362 : f32 to vector<1x256xf32>
      %365 = arith.mulf %364, %49 : vector<1x256xf32>
      %366 = vector.broadcast %363 : f32 to vector<1x256xf32>
      %367 = arith.mulf %366, %51 : vector<1x256xf32>
      %368 = arith.addf %365, %367 : vector<1x256xf32>
      %369 = arith.addf %353, %368 : vector<1x256xf32>
      %c0_181 = arith.constant 0 : index
      %c33 = arith.constant 33 : index
      %370 = memref.load %arg2[%c0_181, %c33] : memref<2x49xf32, #tpu.memory_space<smem>>
      %c1_182 = arith.constant 1 : index
      %c33_183 = arith.constant 33 : index
      %371 = memref.load %arg2[%c1_182, %c33_183] : memref<2x49xf32, #tpu.memory_space<smem>>
      %372 = vector.broadcast %370 : f32 to vector<1x256xf32>
      %373 = arith.mulf %372, %57 : vector<1x256xf32>
      %374 = vector.broadcast %371 : f32 to vector<1x256xf32>
      %375 = arith.mulf %374, %59 : vector<1x256xf32>
      %376 = arith.addf %373, %375 : vector<1x256xf32>
      %377 = arith.addf %361, %376 : vector<1x256xf32>
      %c0_184 = arith.constant 0 : index
      %c34 = arith.constant 34 : index
      %378 = memref.load %arg2[%c0_184, %c34] : memref<2x49xf32, #tpu.memory_space<smem>>
      %c1_185 = arith.constant 1 : index
      %c34_186 = arith.constant 34 : index
      %379 = memref.load %arg2[%c1_185, %c34_186] : memref<2x49xf32, #tpu.memory_space<smem>>
      %380 = vector.broadcast %378 : f32 to vector<1x256xf32>
      %381 = arith.mulf %380, %65 : vector<1x256xf32>
      %382 = vector.broadcast %379 : f32 to vector<1x256xf32>
      %383 = arith.mulf %382, %67 : vector<1x256xf32>
      %384 = arith.addf %381, %383 : vector<1x256xf32>
      %385 = arith.addf %369, %384 : vector<1x256xf32>
      %386 = arith.addf %385, %377 : vector<1x256xf32>
      %c0_187 = arith.constant 0 : index
      %c48_188 = arith.constant 48 : index
      %387 = vector.load %arg7[%c0_187, %c48_188] : memref<1x352xf32, #tpu.memory_space<vmem>>, vector<1x256xf32>
      tpu.vector_store %arg7[%c0_187, %c48_188], %386 {strides = array<i32>} : memref<1x352xf32, #tpu.memory_space<vmem>>, vector<1x256xf32>,
      %c0_189 = arith.constant 0 : index
      %c64 = arith.constant 64 : index
      %388 = vector.load %arg7[%c0_189, %c64] : memref<1x352xf32, #tpu.memory_space<vmem>>, vector<1x256xf32>
      %c240_i32 = arith.constant 240 : i32
      %389 = vector.broadcast %c240_i32 : i32 to vector<1x256xi32>
      %390 = arith.cmpi slt, %15, %389 : vector<1x256xi32>
      %cst_190 = arith.constant 0.000000e+00 : f32
      %391 = vector.broadcast %cst_190 : f32 to vector<1x256xf32>
      %392 = arith.select %390, %388, %391 : vector<1x256xi1>, vector<1x256xf32>
      %393 = arith.addf %267, %392 : vector<1x256xf32>
      %cst_191 = arith.constant 0.000000e+00 : f32
      %394 = vector.broadcast %cst_191 : f32 to vector<1x256xf32>
      %cst_192 = arith.constant 0.000000e+00 : f32
      %395 = vector.broadcast %cst_192 : f32 to vector<1x256xf32>
      %c0_193 = arith.constant 0 : index
      %c35 = arith.constant 35 : index
      %396 = memref.load %arg2[%c0_193, %c35] : memref<2x49xf32, #tpu.memory_space<smem>>
      %c1_194 = arith.constant 1 : index
      %c35_195 = arith.constant 35 : index
      %397 = memref.load %arg2[%c1_194, %c35_195] : memref<2x49xf32, #tpu.memory_space<smem>>
      %398 = vector.broadcast %396 : f32 to vector<1x256xf32>
      %399 = arith.mulf %398, %23 : vector<1x256xf32>
      %400 = vector.broadcast %397 : f32 to vector<1x256xf32>
      %401 = arith.mulf %400, %25 : vector<1x256xf32>
      %402 = arith.addf %399, %401 : vector<1x256xf32>
      %403 = arith.addf %394, %402 : vector<1x256xf32>
      %c0_196 = arith.constant 0 : index
      %c36 = arith.constant 36 : index
      %404 = memref.load %arg2[%c0_196, %c36] : memref<2x49xf32, #tpu.memory_space<smem>>
      %c1_197 = arith.constant 1 : index
      %c36_198 = arith.constant 36 : index
      %405 = memref.load %arg2[%c1_197, %c36_198] : memref<2x49xf32, #tpu.memory_space<smem>>
      %406 = vector.broadcast %404 : f32 to vector<1x256xf32>
      %407 = arith.mulf %406, %31 : vector<1x256xf32>
      %408 = vector.broadcast %405 : f32 to vector<1x256xf32>
      %409 = arith.mulf %408, %33 : vector<1x256xf32>
      %410 = arith.addf %407, %409 : vector<1x256xf32>
      %411 = arith.addf %395, %410 : vector<1x256xf32>
      %c0_199 = arith.constant 0 : index
      %c37 = arith.constant 37 : index
      %412 = memref.load %arg2[%c0_199, %c37] : memref<2x49xf32, #tpu.memory_space<smem>>
      %c1_200 = arith.constant 1 : index
      %c37_201 = arith.constant 37 : index
      %413 = memref.load %arg2[%c1_200, %c37_201] : memref<2x49xf32, #tpu.memory_space<smem>>
      %414 = vector.broadcast %412 : f32 to vector<1x256xf32>
      %415 = arith.mulf %414, %39 : vector<1x256xf32>
      %416 = vector.broadcast %413 : f32 to vector<1x256xf32>
      %417 = arith.mulf %416, %41 : vector<1x256xf32>
      %418 = arith.addf %415, %417 : vector<1x256xf32>
      %419 = arith.addf %403, %418 : vector<1x256xf32>
      %c0_202 = arith.constant 0 : index
      %c38 = arith.constant 38 : index
      %420 = memref.load %arg2[%c0_202, %c38] : memref<2x49xf32, #tpu.memory_space<smem>>
      %c1_203 = arith.constant 1 : index
      %c38_204 = arith.constant 38 : index
      %421 = memref.load %arg2[%c1_203, %c38_204] : memref<2x49xf32, #tpu.memory_space<smem>>
      %422 = vector.broadcast %420 : f32 to vector<1x256xf32>
      %423 = arith.mulf %422, %42 : vector<1x256xf32>
      %424 = vector.broadcast %421 : f32 to vector<1x256xf32>
      %425 = arith.mulf %424, %43 : vector<1x256xf32>
      %426 = arith.addf %423, %425 : vector<1x256xf32>
      %427 = arith.addf %411, %426 : vector<1x256xf32>
      %c0_205 = arith.constant 0 : index
      %c39 = arith.constant 39 : index
      %428 = memref.load %arg2[%c0_205, %c39] : memref<2x49xf32, #tpu.memory_space<smem>>
      %c1_206 = arith.constant 1 : index
      %c39_207 = arith.constant 39 : index
      %429 = memref.load %arg2[%c1_206, %c39_207] : memref<2x49xf32, #tpu.memory_space<smem>>
      %430 = vector.broadcast %428 : f32 to vector<1x256xf32>
      %431 = arith.mulf %430, %49 : vector<1x256xf32>
      %432 = vector.broadcast %429 : f32 to vector<1x256xf32>
      %433 = arith.mulf %432, %51 : vector<1x256xf32>
      %434 = arith.addf %431, %433 : vector<1x256xf32>
      %435 = arith.addf %419, %434 : vector<1x256xf32>
      %c0_208 = arith.constant 0 : index
      %c40 = arith.constant 40 : index
      %436 = memref.load %arg2[%c0_208, %c40] : memref<2x49xf32, #tpu.memory_space<smem>>
      %c1_209 = arith.constant 1 : index
      %c40_210 = arith.constant 40 : index
      %437 = memref.load %arg2[%c1_209, %c40_210] : memref<2x49xf32, #tpu.memory_space<smem>>
      %438 = vector.broadcast %436 : f32 to vector<1x256xf32>
      %439 = arith.mulf %438, %57 : vector<1x256xf32>
      %440 = vector.broadcast %437 : f32 to vector<1x256xf32>
      %441 = arith.mulf %440, %59 : vector<1x256xf32>
      %442 = arith.addf %439, %441 : vector<1x256xf32>
      %443 = arith.addf %427, %442 : vector<1x256xf32>
      %c0_211 = arith.constant 0 : index
      %c41 = arith.constant 41 : index
      %444 = memref.load %arg2[%c0_211, %c41] : memref<2x49xf32, #tpu.memory_space<smem>>
      %c1_212 = arith.constant 1 : index
      %c41_213 = arith.constant 41 : index
      %445 = memref.load %arg2[%c1_212, %c41_213] : memref<2x49xf32, #tpu.memory_space<smem>>
      %446 = vector.broadcast %444 : f32 to vector<1x256xf32>
      %447 = arith.mulf %446, %65 : vector<1x256xf32>
      %448 = vector.broadcast %445 : f32 to vector<1x256xf32>
      %449 = arith.mulf %448, %67 : vector<1x256xf32>
      %450 = arith.addf %447, %449 : vector<1x256xf32>
      %451 = arith.addf %435, %450 : vector<1x256xf32>
      %452 = arith.addf %451, %443 : vector<1x256xf32>
      %c0_214 = arith.constant 0 : index
      %c48_215 = arith.constant 48 : index
      %453 = vector.load %arg8[%c0_214, %c48_215] : memref<1x352xf32, #tpu.memory_space<vmem>>, vector<1x256xf32>
      tpu.vector_store %arg8[%c0_214, %c48_215], %452 {strides = array<i32>} : memref<1x352xf32, #tpu.memory_space<vmem>>, vector<1x256xf32>,
      %c0_216 = arith.constant 0 : index
      %c80 = arith.constant 80 : index
      %454 = vector.load %arg8[%c0_216, %c80] : memref<1x352xf32, #tpu.memory_space<vmem>>, vector<1x256xf32>
      %c224_i32 = arith.constant 224 : i32
      %455 = vector.broadcast %c224_i32 : i32 to vector<1x256xi32>
      %456 = arith.cmpi slt, %15, %455 : vector<1x256xi32>
      %cst_217 = arith.constant 0.000000e+00 : f32
      %457 = vector.broadcast %cst_217 : f32 to vector<1x256xf32>
      %458 = arith.select %456, %454, %457 : vector<1x256xi1>, vector<1x256xf32>
      %459 = arith.addf %327, %458 : vector<1x256xf32>
      %cst_218 = arith.constant 0.000000e+00 : f32
      %460 = vector.broadcast %cst_218 : f32 to vector<1x256xf32>
      %cst_219 = arith.constant 0.000000e+00 : f32
      %461 = vector.broadcast %cst_219 : f32 to vector<1x256xf32>
      %c0_220 = arith.constant 0 : index
      %c42 = arith.constant 42 : index
      %462 = memref.load %arg2[%c0_220, %c42] : memref<2x49xf32, #tpu.memory_space<smem>>
      %c1_221 = arith.constant 1 : index
      %c42_222 = arith.constant 42 : index
      %463 = memref.load %arg2[%c1_221, %c42_222] : memref<2x49xf32, #tpu.memory_space<smem>>
      %464 = vector.broadcast %462 : f32 to vector<1x256xf32>
      %465 = arith.mulf %464, %23 : vector<1x256xf32>
      %466 = vector.broadcast %463 : f32 to vector<1x256xf32>
      %467 = arith.mulf %466, %25 : vector<1x256xf32>
      %468 = arith.addf %465, %467 : vector<1x256xf32>
      %469 = arith.addf %460, %468 : vector<1x256xf32>
      %c0_223 = arith.constant 0 : index
      %c43 = arith.constant 43 : index
      %470 = memref.load %arg2[%c0_223, %c43] : memref<2x49xf32, #tpu.memory_space<smem>>
      %c1_224 = arith.constant 1 : index
      %c43_225 = arith.constant 43 : index
      %471 = memref.load %arg2[%c1_224, %c43_225] : memref<2x49xf32, #tpu.memory_space<smem>>
      %472 = vector.broadcast %470 : f32 to vector<1x256xf32>
      %473 = arith.mulf %472, %31 : vector<1x256xf32>
      %474 = vector.broadcast %471 : f32 to vector<1x256xf32>
      %475 = arith.mulf %474, %33 : vector<1x256xf32>
      %476 = arith.addf %473, %475 : vector<1x256xf32>
      %477 = arith.addf %461, %476 : vector<1x256xf32>
      %c0_226 = arith.constant 0 : index
      %c44 = arith.constant 44 : index
      %478 = memref.load %arg2[%c0_226, %c44] : memref<2x49xf32, #tpu.memory_space<smem>>
      %c1_227 = arith.constant 1 : index
      %c44_228 = arith.constant 44 : index
      %479 = memref.load %arg2[%c1_227, %c44_228] : memref<2x49xf32, #tpu.memory_space<smem>>
      %480 = vector.broadcast %478 : f32 to vector<1x256xf32>
      %481 = arith.mulf %480, %39 : vector<1x256xf32>
      %482 = vector.broadcast %479 : f32 to vector<1x256xf32>
      %483 = arith.mulf %482, %41 : vector<1x256xf32>
      %484 = arith.addf %481, %483 : vector<1x256xf32>
      %485 = arith.addf %469, %484 : vector<1x256xf32>
      %c0_229 = arith.constant 0 : index
      %c45 = arith.constant 45 : index
      %486 = memref.load %arg2[%c0_229, %c45] : memref<2x49xf32, #tpu.memory_space<smem>>
      %c1_230 = arith.constant 1 : index
      %c45_231 = arith.constant 45 : index
      %487 = memref.load %arg2[%c1_230, %c45_231] : memref<2x49xf32, #tpu.memory_space<smem>>
      %488 = vector.broadcast %486 : f32 to vector<1x256xf32>
      %489 = arith.mulf %488, %42 : vector<1x256xf32>
      %490 = vector.broadcast %487 : f32 to vector<1x256xf32>
      %491 = arith.mulf %490, %43 : vector<1x256xf32>
      %492 = arith.addf %489, %491 : vector<1x256xf32>
      %493 = arith.addf %477, %492 : vector<1x256xf32>
      %c0_232 = arith.constant 0 : index
      %c46 = arith.constant 46 : index
      %494 = memref.load %arg2[%c0_232, %c46] : memref<2x49xf32, #tpu.memory_space<smem>>
      %c1_233 = arith.constant 1 : index
      %c46_234 = arith.constant 46 : index
      %495 = memref.load %arg2[%c1_233, %c46_234] : memref<2x49xf32, #tpu.memory_space<smem>>
      %496 = vector.broadcast %494 : f32 to vector<1x256xf32>
      %497 = arith.mulf %496, %49 : vector<1x256xf32>
      %498 = vector.broadcast %495 : f32 to vector<1x256xf32>
      %499 = arith.mulf %498, %51 : vector<1x256xf32>
      %500 = arith.addf %497, %499 : vector<1x256xf32>
      %501 = arith.addf %485, %500 : vector<1x256xf32>
      %c0_235 = arith.constant 0 : index
      %c47 = arith.constant 47 : index
      %502 = memref.load %arg2[%c0_235, %c47] : memref<2x49xf32, #tpu.memory_space<smem>>
      %c1_236 = arith.constant 1 : index
      %c47_237 = arith.constant 47 : index
      %503 = memref.load %arg2[%c1_236, %c47_237] : memref<2x49xf32, #tpu.memory_space<smem>>
      %504 = vector.broadcast %502 : f32 to vector<1x256xf32>
      %505 = arith.mulf %504, %57 : vector<1x256xf32>
      %506 = vector.broadcast %503 : f32 to vector<1x256xf32>
      %507 = arith.mulf %506, %59 : vector<1x256xf32>
      %508 = arith.addf %505, %507 : vector<1x256xf32>
      %509 = arith.addf %493, %508 : vector<1x256xf32>
      %c0_238 = arith.constant 0 : index
      %c48_239 = arith.constant 48 : index
      %510 = memref.load %arg2[%c0_238, %c48_239] : memref<2x49xf32, #tpu.memory_space<smem>>
      %c1_240 = arith.constant 1 : index
      %c48_241 = arith.constant 48 : index
      %511 = memref.load %arg2[%c1_240, %c48_241] : memref<2x49xf32, #tpu.memory_space<smem>>
      %512 = vector.broadcast %510 : f32 to vector<1x256xf32>
      %513 = arith.mulf %512, %65 : vector<1x256xf32>
      %514 = vector.broadcast %511 : f32 to vector<1x256xf32>
      %515 = arith.mulf %514, %67 : vector<1x256xf32>
      %516 = arith.addf %513, %515 : vector<1x256xf32>
      %517 = arith.addf %501, %516 : vector<1x256xf32>
      %518 = arith.addf %517, %509 : vector<1x256xf32>
      %c0_242 = arith.constant 0 : index
      %c48_243 = arith.constant 48 : index
      %519 = vector.load %arg7[%c0_242, %c48_243] : memref<1x352xf32, #tpu.memory_space<vmem>>, vector<1x256xf32>
      tpu.vector_store %arg7[%c0_242, %c48_243], %518 {strides = array<i32>} : memref<1x352xf32, #tpu.memory_space<vmem>>, vector<1x256xf32>,
      %c0_244 = arith.constant 0 : index
      %c96 = arith.constant 96 : index
      %520 = vector.load %arg7[%c0_244, %c96] : memref<1x352xf32, #tpu.memory_space<vmem>>, vector<1x256xf32>
      %c208_i32 = arith.constant 208 : i32
      %521 = vector.broadcast %c208_i32 : i32 to vector<1x256xi32>
      %522 = arith.cmpi slt, %15, %521 : vector<1x256xi32>
      %cst_245 = arith.constant 0.000000e+00 : f32
      %523 = vector.broadcast %cst_245 : f32 to vector<1x256xf32>
      %524 = arith.select %522, %520, %523 : vector<1x256xi1>, vector<1x256xf32>
      %525 = arith.addf %393, %524 : vector<1x256xf32>
      %526 = arith.addf %525, %459 : vector<1x256xf32>
      %527 = arith.negf %526 : vector<1x256xf32>
      %528 = math.exp %527 : vector<1x256xf32>
      %cst_246 = arith.constant 1.000000e+00 : f32
      %529 = vector.broadcast %cst_246 : f32 to vector<1x256xf32>
      %530 = arith.addf %529, %528 : vector<1x256xf32>
      %531 = arith.divf %529, %530 : vector<1x256xf32>
      %c0_247 = arith.constant 0 : index
      %c0_248 = arith.constant 0 : index
      %c0_249 = arith.constant 0 : index
      %532 = vector.load %arg4[%c0_247, %c0_248, %c0_249] : memref<1x1x256xf32, #tpu.memory_space<vmem>>, vector<1x1x256xf32>
      %533 = vector.shape_cast %532 : vector<1x1x256xf32> to vector<1x256xf32>
      %534 = vector.shape_cast %531 : vector<1x256xf32> to vector<1x1x256xf32>
      tpu.vector_store %arg4[%c0_247, %c0_248, %c0_249], %534 {strides = array<i32>} : memref<1x1x256xf32, #tpu.memory_space<vmem>>, vector<1x1x256xf32>,
    } else {
    }
    return
  }
  func.func @transform_0(%arg0: i32, %arg1: i32) -> (i32, i32) {
    %c0_i32 = arith.constant 0 : i32
    %c0_i32_0 = arith.constant 0 : i32
    %c0_i32_1 = arith.constant 0 : i32
    return %c0_i32, %c0_i32_0 : i32, i32
  }
  func.func @transform_1(%arg0: i32, %arg1: i32) -> (i32, i32, i32) {
    %c0_i32 = arith.constant 0 : i32
    %c0_i32_0 = arith.constant 0 : i32
    return %arg0, %arg1, %c0_i32 : i32, i32, i32
  }
  func.func @transform_2(%arg0: i32, %arg1: i32) -> (i32, i32, i32) {
    %c0_i32 = arith.constant 0 : i32
    %c0_i32_0 = arith.constant 0 : i32
    %c0_i32_1 = arith.constant 0 : i32
    return %arg0, %c0_i32, %c0_i32_0 : i32, i32, i32
  }
}

</mosaic_0001>

<llo_original>
// kernel: spatial_attention.1
$region0: #{spatial_attention.1}
  #allocation0 [shape = 'u32[]', space=smem, size = 0x4, offset = 0x4, fixed_abs, tag = 'smem constant byte address 0x4 - core index']
  #allocation1 [shape = 'u32[72,128]{1,0:T(1,128)}', space=vmem, size = 0x9000, scoped, tag = 'internal scratch']
  #allocation2 [shape = 'f32[1,262]{1,0:T(1,128)}', space=vmem, size = 0x600, scoped, tag = 'scratch operand']
  #allocation3 [shape = 'f32[1,262]{1,0:T(1,128)}', space=vmem, size = 0x600, scoped, tag = 'scratch operand']
  #allocation4 [shape = 'f32[1,352]{1,0:T(1,128)}', space=vmem, size = 0x600, scoped, tag = 'scratch operand']
  #allocation5 [shape = 'f32[1,352]{1,0:T(1,128)}', space=vmem, size = 0x600, scoped, tag = 'scratch operand']
  %s0 = inlined_call_operand.vmem [shape: f32[2,49], index: 0, kind: input, shape index: {}]
  %s1 = inlined_call_operand.vmem [shape: f32[2,4,256], index: 1, kind: input, shape index: {}]
  %s2 = inlined_call_operand.vmem [shape: f32[2,1,256], index: 2, kind: output, shape index: {}]
  %s3 = sld [smem:[#allocation0]]
  $region53: #{spatial_attention.1} parent=0
    _
  %s5 = ssub.s32 1, %s3
  %s6 = scalar_select 0, %s5, %s3
  $region1: #{spatial_attention.1} parent=0
    #allocation6 [shape = 'u8[1024]{0}', space=smem, size = 0x400, scoped, tag = 'input window, operand 0, single buffered']
    #allocation7 [shape = 's32[2]{0}', space=sflag, size = 0x8, scoped, tag = 'scoped memory for spatial_attention.1']
    %7 = vsyncpa [#allocation7], 0
    loop: start=0, step=1, limit=4
    $region2: #{spatial_attention.1} parent=1 // loop_pre_header
      _
    $region3: #{spatial_attention.1} parent=1 // loop_header
      %s9 = sphi 0, %s13
      %p10 = scmp.ge.s32.totalorder %s9, 4
      %s16 = sphi 0, %s28
      %s17 = sphi 0, %s24
      %s18 = sphi 0, %s16
      %s19 = sphi 0, %s17
      %s20 = sphi 0, %s18
      %s21 = sphi 0, %s19
      %s29 = sphi 0, %s29
      %s31 = sphi 0, %s29
      %s32 = sphi 0, %s31
      %s46 = sphi 0, %s32
      %s54 = sphi 0, %s56
      %s57 = sphi 0, %s54
      %s58 = sphi 0, %s57
      %s74 = sphi 0, %s58
      %s80 = sphi 0, %s82
      %s83 = sphi 0, %s80
      %s84 = sphi 0, %s83
      %s100 = sphi 0, %s84
    $region4: #{spatial_attention.1} parent=1 // loop_header_branch
      %12 = sbr.rel (%p10) target = $region8
    $region5: #{spatial_attention.1} parent=1 // loop_body
      %s14 = ssub.s32 %s9, 1
      %s15 = ssub.s32 %s9, 2
      %s22 = sadd.s32 1, %s17
      %p23 = scmp.ge.s32.totalorder %s22, 1
      %s24 = scalar_select %p23, 0, %s22
      %s25 = sadd.s32 1, %s16
      %s26 = scalar_select %p23, %s25, %s16
      %p27 = scmp.ge.s32.totalorder %s26, 2
      %s28 = scalar_select %p27, 0, %s26
      %s30 = sadd.s32 %s29, 1
      %p33 = scmp.eq.s32.totalorder %s9, 1
      %p34 = scmp.ne.s32.totalorder %s29, %s31
      %p35 = scmp.eq.s32.totalorder %s9, 0
      %p36 = por %p34, %p35
      %p37 = scmp.ne.s32.totalorder %s29, %s31
      %p38 = scmp.eq.s32.totalorder %s14, 1
      %p39 = por %p37, %p38
      %p40 = scmp.ne.s32.totalorder %s31, %s32
      %p41 = scmp.eq.s32.totalorder %s14, 0
      %p42 = por %p40, %p41
      %p43 = scmp.ne.s32.totalorder %s31, %s32
      %p44 = scmp.eq.s32.totalorder %s15, 1
      %p45 = por %p43, %p44
      %p47 = scmp.ne.s32.totalorder %s32, %s46
      %p48 = scmp.eq.s32.totalorder %s15, 0
      %p49 = por %p47, %p48
      %s50 = ssub.s32 %s16, %s28
      %s51 = ssub.s32 %s17, %s24
      %s52 = sor.u32 %s50, %s51
      %p53 = scmp.eq.s32.totalorder %s52, 0
      %s55 = sadd.s32 %s54, 1
      %s56 = scalar_select %p53, %s54, %s55
      %p59 = pneg %p53
      %p60 = scmp.eq.s32.totalorder %s9, 1
      %p61 = por %p59, %p60
      %p62 = scmp.ne.s32.totalorder %s54, %s57
      %p63 = scmp.eq.s32.totalorder %s9, 0
      %p64 = por %p62, %p63
      %p65 = scmp.ne.s32.totalorder %s54, %s57
      %p66 = scmp.eq.s32.totalorder %s14, 1
      %p67 = por %p65, %p66
      %p68 = scmp.ne.s32.totalorder %s57, %s58
      %p69 = scmp.eq.s32.totalorder %s14, 0
      %p70 = por %p68, %p69
      %p71 = scmp.ne.s32.totalorder %s57, %s58
      %p72 = scmp.eq.s32.totalorder %s15, 1
      %p73 = por %p71, %p72
      %p75 = scmp.ne.s32.totalorder %s58, %s74
      %p76 = scmp.eq.s32.totalorder %s15, 0
      %p77 = por %p75, %p76
      %s78 = ssub.s32 %s16, %s28
      %p79 = scmp.eq.s32.totalorder %s78, 0
      %s81 = sadd.s32 %s80, 1
      %s82 = scalar_select %p79, %s80, %s81
      %p85 = pneg %p79
      %p86 = scmp.eq.s32.totalorder %s9, 1
      %p87 = por %p85, %p86
      %p88 = scmp.ne.s32.totalorder %s80, %s83
      %p89 = scmp.eq.s32.totalorder %s9, 0
      %p90 = por %p88, %p89
      %p91 = scmp.ne.s32.totalorder %s80, %s83
      %p92 = scmp.eq.s32.totalorder %s14, 1
      %p93 = por %p91, %p92
      %p94 = scmp.ne.s32.totalorder %s83, %s84
      %p95 = scmp.eq.s32.totalorder %s14, 0
      %p96 = por %p94, %p95
      %p97 = scmp.ne.s32.totalorder %s83, %s84
      %p98 = scmp.eq.s32.totalorder %s15, 1
      %p99 = por %p97, %p98
      %p101 = scmp.ne.s32.totalorder %s84, %s100
      %p102 = scmp.eq.s32.totalorder %s15, 0
      %p103 = por %p101, %p102
      %p104 = scmp.le.s32.totalorder 1, %s9
      %p105 = scmp.lt.s32.totalorder %s9, 3
      %p106 = pnand %p104, %p105
      %p107 = pneg %p106
      // Predicated region
      $region9: #{spatial_attention.1} parent=5 // pred_check
        _
      $region10: #{spatial_attention.1} parent=5 // pred_check_branch
        %109 = sbr.rel (%p106) target = $region12
      $region11: #{spatial_attention.1} parent=5 // pred_region
        %s110 = ssub.s32 %s9, 1
        // Predicated region
        $region13: #{spatial_attention.1} parent=11 // pred_check
          %p111 = pneg %p42
        $region14: #{spatial_attention.1} parent=11 // pred_check_branch
          %113 = sbr.rel (%p111) target = $region16
        $region15: #{spatial_attention.1} parent=11 // pred_region
          %115 = vsyncadd [#allocation7], 0
          %s117 = sshll.u32 %s0, 4
          %s118 = int_to_ptr.vmem [resolvable:$true] %s117
          %120 = dma.vmem_to_smem %s118, 32, [#allocation6], [#allocation7]
        $region16: #{spatial_attention.1} parent=11 // pred_fallthru
          _
      $region12: #{spatial_attention.1} parent=5 // pred_fallthru
        _
      %p121 = scmp.lt.s32.totalorder %s9, 2
      // Predicated region
      $region17: #{spatial_attention.1} parent=5 // pred_check
        %p122 = pneg %p121
      $region18: #{spatial_attention.1} parent=5 // pred_check_branch
        %124 = sbr.rel (%p122) target = $region20
      $region19: #{spatial_attention.1} parent=5 // pred_region
        // Predicated region
        $region21: #{spatial_attention.1} parent=19 // pred_check
          %p125 = pneg %p64
        $region22: #{spatial_attention.1} parent=19 // pred_check_branch
          %127 = sbr.rel (%p125) target = $region24
        $region23: #{spatial_attention.1} parent=19 // pred_region
          %p128 = scmp.lt.s32.totalorder %s16, 1
          %s129 = scalar_select %p128, %s16, 1
          %p130 = scmp.lt.s32.totalorder %s17, 0
          %s131 = scalar_select %p130, %s17, 0
          %s132 = smul.addr %s131, 2
          %s133 = smul.addr %s129, 2
          %s134 = sadd.s32 %s132, %s133
          %s135 = smul.addr %s134, 4
          %s136 = scalar_lea.vmem %s1, %s135
        $region24: #{spatial_attention.1} parent=19 // pred_fallthru
          _
      $region20: #{spatial_attention.1} parent=5 // pred_fallthru
        _
      %p137 = scmp.le.s32.totalorder 1, %s9
      %p138 = scmp.lt.s32.totalorder %s9, 3
      %p139 = pnand %p137, %p138
      %p140 = pneg %p139
      // Predicated region
      $region25: #{spatial_attention.1} parent=5 // pred_check
        _
      $region26: #{spatial_attention.1} parent=5 // pred_check_branch
        %142 = sbr.rel (%p139) target = $region28
      $region27: #{spatial_attention.1} parent=5 // pred_region
        %s143 = ssub.s32 %s9, 1
        // Predicated region
        $region29: #{spatial_attention.1} parent=27 // pred_check
          %p144 = pneg %p42
        $region30: #{spatial_attention.1} parent=27 // pred_check_branch
          %146 = sbr.rel (%p144) target = $region32
        $region31: #{spatial_attention.1} parent=27 // pred_region
          %148 = dma.done [#allocation7], 32
        $region32: #{spatial_attention.1} parent=27 // pred_fallthru
          _
        %149 = sfence
        %p150 = pneg %p42
        %p151 = pneg %p39
        %p152 = scmp.lt.s32.totalorder %s18, 1
        %s153 = scalar_select %p152, %s18, 1
        %p154 = scmp.lt.s32.totalorder %s19, 0
        %s155 = scalar_select %p154, %s19, 0
        %s156 = smul.addr %s155, 2
        %s157 = smul.addr %s153, 2
        %s158 = sadd.s32 %s156, %s157
        %s159 = smul.addr %s158, 4
        %s160 = scalar_lea.vmem %s1, %s159
        %p161 = pneg %p70
        %p162 = pneg %p67
        %p163 = pneg %p96
        %p164 = pneg %p93
        %p165 = scmp.lt.s32.totalorder %s18, 1
        %s166 = scalar_select %p165, %s18, 1
        %s167 = smul.addr %s166, 2
        %s168 = scalar_lea.vmem %s2, %s167
        %p169 = scmp.lt.s32.totalorder %s18, 1
        %s170 = scalar_select %p169, %s18, 1
        %p171 = scmp.lt.s32.totalorder %s19, 0
        %s172 = scalar_select %p171, %s19, 0
        %s173 = smul.addr %s172, 2
        %s174 = smul.addr %s170, 2
        %s175 = sadd.s32 %s173, %s174
        %s176 = smul.addr %s175, 4
        %s177 = scalar_lea.vmem %s1, %s176
        %p178 = scmp.lt.s32.totalorder %s18, 1
        %s179 = scalar_select %p178, %s18, 1
        %s180 = smul.addr %s179, 2
        %s181 = scalar_lea.vmem %s2, %s180
        %p182 = scmp.eq.s32.totalorder %s19, 0
        // Predicated region
        $region33: #{spatial_attention.1} parent=27 // pred_check
          %p183 = pneg %p182
        $region34: #{spatial_attention.1} parent=27 // pred_check_branch
          %185 = sbr.rel (%p183) target = $region36
        $region35: #{spatial_attention.1} parent=27 // pred_region
          %v186 = vlaneseq
          %vm187 = vcmp.ge.s32.totalorder %v186, 3
          %vm188 = vcmp.lt.s32.totalorder %v186, 259
          %vm189 = vmand %vm187, %vm188
          %190 = vst.msk [vmem:[#allocation2] sm:$0x7] %vm189, 0.0
          %191 = vst.msk [vmem:[#allocation3] sm:$0x7] %vm189, -inf
        $region36: #{spatial_attention.1} parent=27 // pred_fallthru
          _
        %v192 = vld [vmem:[%s177] sm:$0xff]
        %v193 = vld [vmem:[#allocation2] sm:$0x7]
        %195 = vst [vmem:[#allocation1] ss:$2 sm:$0xff] %v192
        %v196 = vld.sshfl [vmem:[#allocation1] sm:$0xff pattern:$0x75316420]
        %v197 = vld.sshfl [vmem:[#allocation1 + $0x8] sm:$0xff pattern:$0x75316420]
        %vm200 = vcmask 1043456
        %v201 = vsel %vm200, %v196, 0.0
        %v202 = vrot.slane %v201, 4
        %v203 = vadd.f32 %v201, %v202
        %v204 = vrot.slane %v203, 2
        %v205 = vadd.f32 %v203, %v204
        %v206 = vrot.slane %v205, 1
        %v207 = vadd.f32 %v205, %v206
        %v208 = vsel %vm200, %v197, 0.0
        %v209 = vrot.slane %v208, 4
        %v210 = vadd.f32 %v208, %v209
        %v211 = vrot.slane %v210, 2
        %v212 = vadd.f32 %v210, %v211
        %v213 = vrot.slane %v212, 1
        %v214 = vadd.f32 %v212, %v213
        %v217 = vrot.slane %v214, 7
        %vm218 = vcmask 1040384
        %v219 = vsel %vm218, %v207, %v217
        %220 = vrot.lane.b32.xlu0 %v219, 3
        %v221 = vpop.permute.xlu0 %220
        %v222 = vrot.slane %v221, 7
        %vm223 = vcmask 23552
        %v224 = vsel %vm223, %v222, %v221
        %v226 = vadd.f32 %v193, %v224
        %v227 = vlaneseq
        %vm228 = vcmp.ge.s32.totalorder %v227, 3
        %vm229 = vcmp.lt.s32.totalorder %v227, 259
        %vm230 = vmand %vm228, %vm229
        %231 = vst.msk [vmem:[#allocation2] sm:$0x7] %vm230, %v226
        %v232 = vld [vmem:[#allocation3] sm:$0x7]
        %233 = vst [vmem:[#allocation1] ss:$2 sm:$0xff] %v192
        %v234 = vld.sshfl [vmem:[#allocation1] sm:$0xff pattern:$0x75316420]
        %v235 = vld.sshfl [vmem:[#allocation1 + $0x8] sm:$0xff pattern:$0x75316420]
        %v238 = vsel %vm200, %v234, -inf
        %v239 = vrot.slane %v238, 4
        %v240 = vmax.f32 %v238, %v239
        %v241 = vrot.slane %v240, 2
        %v242 = vmax.f32 %v240, %v241
        %v243 = vrot.slane %v242, 1
        %v244 = vmax.f32 %v242, %v243
        %v245 = vsel %vm200, %v235, -inf
        %v246 = vrot.slane %v245, 4
        %v247 = vmax.f32 %v245, %v246
        %v248 = vrot.slane %v247, 2
        %v249 = vmax.f32 %v247, %v248
        %v250 = vrot.slane %v249, 1
        %v251 = vmax.f32 %v249, %v250
        %v254 = vrot.slane %v251, 7
        %v255 = vsel %vm218, %v244, %v254
        %256 = vrot.lane.b32.xlu0 %v255, 3
        %v257 = vpop.permute.xlu0 %256
        %v258 = vrot.slane %v257, 7
        %v259 = vsel %vm223, %v258, %v257
        %v261 = vmax.f32 %v232, %v259
        %262 = vst.msk [vmem:[#allocation3] sm:$0x7] %vm230, %v261
        // Predicated region
        $region37: #{spatial_attention.1} parent=27 // pred_check
          %p263 = pneg %p182
        $region38: #{spatial_attention.1} parent=27 // pred_check_branch
          %265 = sbr.rel (%p263) target = $region40
        $region39: #{spatial_attention.1} parent=27 // pred_region
          %v266 = vlaneseq
          %v267 = vand.u32 %v266, 127
          %v268 = vadd.s32 %v267, 128
          %v269 = vand.u32 %v267, 15
          %v270 = vand.u32 %v268, 15
          %v271 = vld [vmem:[#allocation2] sm:$0x3]
          %v272 = vld [vmem:[#allocation3] sm:$0x3]
          %vm273 = vcmp.ge.s32.totalorder %v269, 3
          %vm274 = vcmp.ge.s32.totalorder %v270, 3
          %v276 = vperm.slane %v271, 0
          %v277 = vperm.slane %v271, 1
          %v280 = vsel %vm273, %v276, 0.0
          %v281 = vsel %vm274, %v277, 0.0
          %v283 = vperm.slane %v272, 0
          %v284 = vperm.slane %v272, 1
          %v287 = vsel %vm273, %v283, 0.0
          %v288 = vsel %vm274, %v284, 0.0
          %v289 = vld [vmem:[#allocation2] sm:$0x7]
          %v290 = vld [vmem:[#allocation3] sm:$0x7]
          %vm291 = vcmp.ge.s32.totalorder %v269, 2
          %vm292 = vcmp.ge.s32.totalorder %v270, 2
          %v294 = vperm.slane %v289, 0
          %v295 = vperm.slane %v289, 1
          %v296 = vperm.slane %v289, 2
          %297 = vrot.lane.b32.xlu0 %v294, 127
          %v298 = vpop.permute.xlu0 %297
          %299 = vrot.lane.b32.xlu0 %v295, 127
          %v300 = vpop.permute.xlu0 %299
          %301 = vrot.lane.b32.xlu0 %v296, 127
          %v302 = vpop.permute.xlu0 %301
          %vm303 = vcmask 1039360
          %v304 = vsel %vm303, %v298, %v300
          %v305 = vsel %vm303, %v300, %v302
          %v308 = vsel %vm291, %v304, 0.0
          %v309 = vsel %vm292, %v305, 0.0
          %v311 = vperm.slane %v290, 0
          %v312 = vperm.slane %v290, 1
          %v313 = vperm.slane %v290, 2
          %314 = vrot.lane.b32.xlu0 %v311, 127
          %v315 = vpop.permute.xlu0 %314
          %316 = vrot.lane.b32.xlu0 %v312, 127
          %v317 = vpop.permute.xlu0 %316
          %318 = vrot.lane.b32.xlu0 %v313, 127
          %v319 = vpop.permute.xlu0 %318
          %v320 = vsel %vm303, %v315, %v317
          %v321 = vsel %vm303, %v317, %v319
          %v324 = vsel %vm291, %v320, 0.0
          %v325 = vsel %vm292, %v321, 0.0
          %vm326 = vcmp.ge.s32.totalorder %v269, 1
          %vm327 = vcmp.ge.s32.totalorder %v270, 1
          %328 = vrot.lane.b32.xlu0 %v294, 126
          %v329 = vpop.permute.xlu0 %328
          %330 = vrot.lane.b32.xlu0 %v295, 126
          %v331 = vpop.permute.xlu0 %330
          %332 = vrot.lane.b32.xlu0 %v296, 126
          %v333 = vpop.permute.xlu0 %332
          %vm334 = vcmask 1031168
          %v335 = vsel %vm334, %v329, %v331
          %v336 = vsel %vm334, %v331, %v333
          %v339 = vsel %vm326, %v335, 0.0
          %v340 = vsel %vm327, %v336, 0.0
          %341 = vrot.lane.b32.xlu0 %v311, 126
          %v342 = vpop.permute.xlu0 %341
          %343 = vrot.lane.b32.xlu0 %v312, 126
          %v344 = vpop.permute.xlu0 %343
          %345 = vrot.lane.b32.xlu0 %v313, 126
          %v346 = vpop.permute.xlu0 %345
          %v347 = vsel %vm334, %v342, %v344
          %v348 = vsel %vm334, %v344, %v346
          %v351 = vsel %vm326, %v347, 0.0
          %v352 = vsel %vm327, %v348, 0.0
          %vm353 = vcmp.lt.s32.totalorder %v269, 15
          %vm354 = vcmp.lt.s32.totalorder %v270, 15
          %355 = vrot.lane.b32.xlu0 %v294, 124
          %v356 = vpop.permute.xlu0 %355
          %357 = vrot.lane.b32.xlu0 %v295, 124
          %v358 = vpop.permute.xlu0 %357
          %359 = vrot.lane.b32.xlu0 %v296, 124
          %v360 = vpop.permute.xlu0 %359
          %vm361 = vcmask 1014784
          %v362 = vsel %vm361, %v356, %v358
          %v363 = vsel %vm361, %v358, %v360
          %v366 = vsel %vm353, %v362, 0.0
          %v367 = vsel %vm354, %v363, 0.0
          %368 = vrot.lane.b32.xlu0 %v311, 124
          %v369 = vpop.permute.xlu0 %368
          %370 = vrot.lane.b32.xlu0 %v312, 124
          %v371 = vpop.permute.xlu0 %370
          %372 = vrot.lane.b32.xlu0 %v313, 124
          %v373 = vpop.permute.xlu0 %372
          %v374 = vsel %vm361, %v369, %v371
          %v375 = vsel %vm361, %v371, %v373
          %v378 = vsel %vm353, %v374, 0.0
          %v379 = vsel %vm354, %v375, 0.0
          %vm380 = vcmp.lt.s32.totalorder %v269, 14
          %vm381 = vcmp.lt.s32.totalorder %v270, 14
          %382 = vrot.lane.b32.xlu0 %v294, 123
          %v383 = vpop.permute.xlu0 %382
          %384 = vrot.lane.b32.xlu0 %v295, 123
          %v385 = vpop.permute.xlu0 %384
          %386 = vrot.lane.b32.xlu0 %v296, 123
          %v387 = vpop.permute.xlu0 %386
          %vm388 = vcmask 1006592
          %v389 = vsel %vm388, %v383, %v385
          %v390 = vsel %vm388, %v385, %v387
          %v393 = vsel %vm380, %v389, 0.0
          %v394 = vsel %vm381, %v390, 0.0
          %395 = vrot.lane.b32.xlu0 %v311, 123
          %v396 = vpop.permute.xlu0 %395
          %397 = vrot.lane.b32.xlu0 %v312, 123
          %v398 = vpop.permute.xlu0 %397
          %399 = vrot.lane.b32.xlu0 %v313, 123
          %v400 = vpop.permute.xlu0 %399
          %v401 = vsel %vm388, %v396, %v398
          %v402 = vsel %vm388, %v398, %v400
          %v405 = vsel %vm380, %v401, 0.0
          %v406 = vsel %vm381, %v402, 0.0
          %vm407 = vcmp.lt.s32.totalorder %v269, 13
          %vm408 = vcmp.lt.s32.totalorder %v270, 13
          %409 = vrot.lane.b32.xlu0 %v294, 122
          %v410 = vpop.permute.xlu0 %409
          %411 = vrot.lane.b32.xlu0 %v295, 122
          %v412 = vpop.permute.xlu0 %411
          %413 = vrot.lane.b32.xlu0 %v296, 122
          %v414 = vpop.permute.xlu0 %413
          %vm415 = vcmask 998400
          %v416 = vsel %vm415, %v410, %v412
          %v417 = vsel %vm415, %v412, %v414
          %v420 = vsel %vm407, %v416, 0.0
          %v421 = vsel %vm408, %v417, 0.0
          %422 = vrot.lane.b32.xlu0 %v311, 122
          %v423 = vpop.permute.xlu0 %422
          %424 = vrot.lane.b32.xlu0 %v312, 122
          %v425 = vpop.permute.xlu0 %424
          %426 = vrot.lane.b32.xlu0 %v313, 122
          %v427 = vpop.permute.xlu0 %426
          %v428 = vsel %vm415, %v423, %v425
          %v429 = vsel %vm415, %v425, %v427
          %v432 = vsel %vm407, %v428, 0.0
          %v433 = vsel %vm408, %v429, 0.0
          %s434 = sld [smem:[#allocation6]]
          %s435 = sld [smem:[#allocation6 + $0x80]]
          %v436 = vstv %s434
          %v437 = vmul.f32 %v436, %v280
          %v438 = vmul.f32 %v436, %v281
          %v439 = vstv %s435
          %v440 = vmul.f32 %v439, %v287
          %v441 = vmul.f32 %v439, %v288
          %v442 = vadd.f32 %v437, %v440
          %v443 = vadd.f32 %v438, %v441
          %v444 = vadd.f32 %v442, 0.0
          %v445 = vadd.f32 %v443, 0.0
          %s446 = sld [smem:[#allocation6 + $0x1]]
          %s447 = sld [smem:[#allocation6 + $0x81]]
          %v448 = vstv %s446
          %v449 = vmul.f32 %v448, %v308
          %v450 = vmul.f32 %v448, %v309
          %v451 = vstv %s447
          %v452 = vmul.f32 %v451, %v324
          %v453 = vmul.f32 %v451, %v325
          %v454 = vadd.f32 %v449, %v452
          %v455 = vadd.f32 %v450, %v453
          %v456 = vadd.f32 %v454, 0.0
          %v457 = vadd.f32 %v455, 0.0
          %s458 = sld [smem:[#allocation6 + $0x2]]
          %s459 = sld [smem:[#allocation6 + $0x82]]
          %v460 = vstv %s458
          %v461 = vmul.f32 %v460, %v339
          %v462 = vmul.f32 %v460, %v340
          %v463 = vstv %s459
          %v464 = vmul.f32 %v463, %v351
          %v465 = vmul.f32 %v463, %v352
          %v466 = vadd.f32 %v461, %v464
          %v467 = vadd.f32 %v462, %v465
          %v468 = vadd.f32 %v444, %v466
          %v469 = vadd.f32 %v445, %v467
          %s470 = sld [smem:[#allocation6 + $0x3]]
          %s471 = sld [smem:[#allocation6 + $0x83]]
          %v472 = vstv %s470
          %v473 = vmul.f32 %v472, %v289
          %v474 = vstv %s471
          %v475 = vmul.f32 %v474, %v290
          %v476 = vadd.f32 %v473, %v475
          %v478 = vperm.slane %v476, 0
          %v479 = vperm.slane %v476, 1
          %v480 = vperm.slane %v476, 2
          %481 = vrot.lane.b32.xlu0 %v478, 125
          %v482 = vpop.permute.xlu0 %481
          %483 = vrot.lane.b32.xlu0 %v479, 125
          %v484 = vpop.permute.xlu0 %483
          %485 = vrot.lane.b32.xlu0 %v480, 125
          %v486 = vpop.permute.xlu0 %485
          %vm487 = vcmask 1022976
          %v488 = vsel %vm487, %v482, %v484
          %v489 = vsel %vm487, %v484, %v486
          %v492 = vadd.f32 %v456, %v488
          %v493 = vadd.f32 %v457, %v489
          %s494 = sld [smem:[#allocation6 + $0x4]]
          %s495 = sld [smem:[#allocation6 + $0x84]]
          %v496 = vstv %s494
          %v497 = vmul.f32 %v496, %v366
          %v498 = vmul.f32 %v496, %v367
          %v499 = vstv %s495
          %v500 = vmul.f32 %v499, %v378
          %v501 = vmul.f32 %v499, %v379
          %v502 = vadd.f32 %v497, %v500
          %v503 = vadd.f32 %v498, %v501
          %v504 = vadd.f32 %v468, %v502
          %v505 = vadd.f32 %v469, %v503
          %s506 = sld [smem:[#allocation6 + $0x5]]
          %s507 = sld [smem:[#allocation6 + $0x85]]
          %v508 = vstv %s506
          %v509 = vmul.f32 %v508, %v393
          %v510 = vmul.f32 %v508, %v394
          %v511 = vstv %s507
          %v512 = vmul.f32 %v511, %v405
          %v513 = vmul.f32 %v511, %v406
          %v514 = vadd.f32 %v509, %v512
          %v515 = vadd.f32 %v510, %v513
          %v516 = vadd.f32 %v492, %v514
          %v517 = vadd.f32 %v493, %v515
          %s518 = sld [smem:[#allocation6 + $0x6]]
          %s519 = sld [smem:[#allocation6 + $0x86]]
          %v520 = vstv %s518
          %v521 = vmul.f32 %v520, %v420
          %v522 = vmul.f32 %v520, %v421
          %v523 = vstv %s519
          %v524 = vmul.f32 %v523, %v432
          %v525 = vmul.f32 %v523, %v433
          %v526 = vadd.f32 %v521, %v524
          %v527 = vadd.f32 %v522, %v525
          %v528 = vadd.f32 %v504, %v526
          %v529 = vadd.f32 %v505, %v527
          %v530 = vadd.f32 %v528, %v516
          %v531 = vadd.f32 %v529, %v517
          %v534 = vrot.slane %v531, 7
          %v535 = vsel %vm218, %v530, %v534
          %536 = vrot.lane.b32.xlu0 %v535, 48
          %v537 = vpop.permute.xlu0 %536
          %v538 = vrot.slane %v537, 7
          %vm539 = vcmask 392192
          %v540 = vsel %vm539, %v538, %v537
          %vm542 = vcmp.ge.s32.totalorder %v227, 48
          %vm543 = vcmp.lt.s32.totalorder %v227, 304
          %vm544 = vmand %vm542, %vm543
          %545 = vst.msk [vmem:[#allocation4] sm:$0x7] %vm544, %v540
          %v546 = vld [vmem:[#allocation4] sm:$0x3]
          %vm547 = vcmp.ge.s32.totalorder %v267, 48
          %vm548 = vcmp.ge.s32.totalorder %v268, 48
          %v550 = vperm.slane %v546, 0
          %v551 = vperm.slane %v546, 1
          %v554 = vsel %vm547, %v550, 0.0
          %v555 = vsel %vm548, %v551, 0.0
          %v556 = vadd.f32 %v554, 0.0
          %v557 = vadd.f32 %v555, 0.0
          %s558 = sld [smem:[#allocation6 + $0x7]]
          %s559 = sld [smem:[#allocation6 + $0x87]]
          %v560 = vstv %s558
          %v561 = vmul.f32 %v560, %v280
          %v562 = vmul.f32 %v560, %v281
          %v563 = vstv %s559
          %v564 = vmul.f32 %v563, %v287
          %v565 = vmul.f32 %v563, %v288
          %v566 = vadd.f32 %v561, %v564
          %v567 = vadd.f32 %v562, %v565
          %v568 = vadd.f32 %v566, 0.0
          %v569 = vadd.f32 %v567, 0.0
          %s570 = sld [smem:[#allocation6 + $0x8]]
          %s571 = sld [smem:[#allocation6 + $0x88]]
          %v572 = vstv %s570
          %v573 = vmul.f32 %v572, %v308
          %v574 = vmul.f32 %v572, %v309
          %v575 = vstv %s571
          %v576 = vmul.f32 %v575, %v324
          %v577 = vmul.f32 %v575, %v325
          %v578 = vadd.f32 %v573, %v576
          %v579 = vadd.f32 %v574, %v577
          %v580 = vadd.f32 %v578, 0.0
          %v581 = vadd.f32 %v579, 0.0
          %s582 = sld [smem:[#allocation6 + $0x9]]
          %s583 = sld [smem:[#allocation6 + $0x89]]
          %v584 = vstv %s582
          %v585 = vmul.f32 %v584, %v339
          %v586 = vmul.f32 %v584, %v340
          %v587 = vstv %s583
          %v588 = vmul.f32 %v587, %v351
          %v589 = vmul.f32 %v587, %v352
          %v590 = vadd.f32 %v585, %v588
          %v591 = vadd.f32 %v586, %v589
          %v592 = vadd.f32 %v568, %v590
          %v593 = vadd.f32 %v569, %v591
          %s594 = sld [smem:[#allocation6 + $0xa]]
          %s595 = sld [smem:[#allocation6 + $0x8a]]
          %v596 = vstv %s594
          %v597 = vmul.f32 %v596, %v289
          %v598 = vstv %s595
          %v599 = vmul.f32 %v598, %v290
          %v600 = vadd.f32 %v597, %v599
          %v602 = vperm.slane %v600, 0
          %v603 = vperm.slane %v600, 1
          %v604 = vperm.slane %v600, 2
          %605 = vrot.lane.b32.xlu0 %v602, 125
          %v606 = vpop.permute.xlu0 %605
          %607 = vrot.lane.b32.xlu0 %v603, 125
          %v608 = vpop.permute.xlu0 %607
          %609 = vrot.lane.b32.xlu0 %v604, 125
          %v610 = vpop.permute.xlu0 %609
          %v611 = vsel %vm487, %v606, %v608
          %v612 = vsel %vm487, %v608, %v610
          %v615 = vadd.f32 %v580, %v611
          %v616 = vadd.f32 %v581, %v612
          %s617 = sld [smem:[#allocation6 + $0xb]]
          %s618 = sld [smem:[#allocation6 + $0x8b]]
          %v619 = vstv %s617
          %v620 = vmul.f32 %v619, %v366
          %v621 = vmul.f32 %v619, %v367
          %v622 = vstv %s618
          %v623 = vmul.f32 %v622, %v378
          %v624 = vmul.f32 %v622, %v379
          %v625 = vadd.f32 %v620, %v623
          %v626 = vadd.f32 %v621, %v624
          %v627 = vadd.f32 %v592, %v625
          %v628 = vadd.f32 %v593, %v626
          %s629 = sld [smem:[#allocation6 + $0xc]]
          %s630 = sld [smem:[#allocation6 + $0x8c]]
          %v631 = vstv %s629
          %v632 = vmul.f32 %v631, %v393
          %v633 = vmul.f32 %v631, %v394
          %v634 = vstv %s630
          %v635 = vmul.f32 %v634, %v405
          %v636 = vmul.f32 %v634, %v406
          %v637 = vadd.f32 %v632, %v635
          %v638 = vadd.f32 %v633, %v636
          %v639 = vadd.f32 %v615, %v637
          %v640 = vadd.f32 %v616, %v638
          %s641 = sld [smem:[#allocation6 + $0xd]]
          %s642 = sld [smem:[#allocation6 + $0x8d]]
          %v643 = vstv %s641
          %v644 = vmul.f32 %v643, %v420
          %v645 = vmul.f32 %v643, %v421
          %v646 = vstv %s642
          %v647 = vmul.f32 %v646, %v432
          %v648 = vmul.f32 %v646, %v433
          %v649 = vadd.f32 %v644, %v647
          %v650 = vadd.f32 %v645, %v648
          %v651 = vadd.f32 %v627, %v649
          %v652 = vadd.f32 %v628, %v650
          %v653 = vadd.f32 %v651, %v639
          %v654 = vadd.f32 %v652, %v640
          %v657 = vrot.slane %v654, 7
          %v658 = vsel %vm218, %v653, %v657
          %659 = vrot.lane.b32.xlu0 %v658, 48
          %v660 = vpop.permute.xlu0 %659
          %v661 = vrot.slane %v660, 7
          %v662 = vsel %vm539, %v661, %v660
          %664 = vst.msk [vmem:[#allocation5] sm:$0x7] %vm544, %v662
          %v665 = vld [vmem:[#allocation5] sm:$0x7]
          %vm666 = vcmp.ge.s32.totalorder %v267, 32
          %vm667 = vcmp.ge.s32.totalorder %v268, 32
          %v669 = vperm.slane %v665, 0
          %v670 = vperm.slane %v665, 1
          %v671 = vperm.slane %v665, 2
          %672 = vrot.lane.b32.xlu0 %v669, 112
          %v673 = vpop.permute.xlu0 %672
          %674 = vrot.lane.b32.xlu0 %v670, 112
          %v675 = vpop.permute.xlu0 %674
          %676 = vrot.lane.b32.xlu0 %v671, 112
          %v677 = vpop.permute.xlu0 %676
          %vm678 = vcmask 916480
          %v679 = vsel %vm678, %v673, %v675
          %v680 = vsel %vm678, %v675, %v677
          %v683 = vsel %vm666, %v679, 0.0
          %v684 = vsel %vm667, %v680, 0.0
          %v685 = vadd.f32 %v683, 0.0
          %v686 = vadd.f32 %v684, 0.0
          %s687 = sld [smem:[#allocation6 + $0xe]]
          %s688 = sld [smem:[#allocation6 + $0x8e]]
          %v689 = vstv %s687
          %v690 = vmul.f32 %v689, %v280
          %v691 = vmul.f32 %v689, %v281
          %v692 = vstv %s688
          %v693 = vmul.f32 %v692, %v287
          %v694 = vmul.f32 %v692, %v288
          %v695 = vadd.f32 %v690, %v693
          %v696 = vadd.f32 %v691, %v694
          %v697 = vadd.f32 %v695, 0.0
          %v698 = vadd.f32 %v696, 0.0
          %s699 = sld [smem:[#allocation6 + $0xf]]
          %s700 = sld [smem:[#allocation6 + $0x8f]]
          %v701 = vstv %s699
          %v702 = vmul.f32 %v701, %v308
          %v703 = vmul.f32 %v701, %v309
          %v704 = vstv %s700
          %v705 = vmul.f32 %v704, %v324
          %v706 = vmul.f32 %v704, %v325
          %v707 = vadd.f32 %v702, %v705
          %v708 = vadd.f32 %v703, %v706
          %v709 = vadd.f32 %v707, 0.0
          %v710 = vadd.f32 %v708, 0.0
          %s711 = sld [smem:[#allocation6 + $0x10]]
          %s712 = sld [smem:[#allocation6 + $0x90]]
          %v713 = vstv %s711
          %v714 = vmul.f32 %v713, %v339
          %v715 = vmul.f32 %v713, %v340
          %v716 = vstv %s712
          %v717 = vmul.f32 %v716, %v351
          %v718 = vmul.f32 %v716, %v352
          %v719 = vadd.f32 %v714, %v717
          %v720 = vadd.f32 %v715, %v718
          %v721 = vadd.f32 %v697, %v719
          %v722 = vadd.f32 %v698, %v720
          %s723 = sld [smem:[#allocation6 + $0x11]]
          %s724 = sld [smem:[#allocation6 + $0x91]]
          %v725 = vstv %s723
          %v726 = vmul.f32 %v725, %v289
          %v727 = vstv %s724
          %v728 = vmul.f32 %v727, %v290
          %v729 = vadd.f32 %v726, %v728
          %v731 = vperm.slane %v729, 0
          %v732 = vperm.slane %v729, 1
          %v733 = vperm.slane %v729, 2
          %734 = vrot.lane.b32.xlu0 %v731, 125
          %v735 = vpop.permute.xlu0 %734
          %736 = vrot.lane.b32.xlu0 %v732, 125
          %v737 = vpop.permute.xlu0 %736
          %738 = vrot.lane.b32.xlu0 %v733, 125
          %v739 = vpop.permute.xlu0 %738
          %v740 = vsel %vm487, %v735, %v737
          %v741 = vsel %vm487, %v737, %v739
          %v744 = vadd.f32 %v709, %v740
          %v745 = vadd.f32 %v710, %v741
          %s746 = sld [smem:[#allocation6 + $0x12]]
          %s747 = sld [smem:[#allocation6 + $0x92]]
          %v748 = vstv %s746
          %v749 = vmul.f32 %v748, %v366
          %v750 = vmul.f32 %v748, %v367
          %v751 = vstv %s747
          %v752 = vmul.f32 %v751, %v378
          %v753 = vmul.f32 %v751, %v379
          %v754 = vadd.f32 %v749, %v752
          %v755 = vadd.f32 %v750, %v753
          %v756 = vadd.f32 %v721, %v754
          %v757 = vadd.f32 %v722, %v755
          %s758 = sld [smem:[#allocation6 + $0x13]]
          %s759 = sld [smem:[#allocation6 + $0x93]]
          %v760 = vstv %s758
          %v761 = vmul.f32 %v760, %v393
          %v762 = vmul.f32 %v760, %v394
          %v763 = vstv %s759
          %v764 = vmul.f32 %v763, %v405
          %v765 = vmul.f32 %v763, %v406
          %v766 = vadd.f32 %v761, %v764
          %v767 = vadd.f32 %v762, %v765
          %v768 = vadd.f32 %v744, %v766
          %v769 = vadd.f32 %v745, %v767
          %s770 = sld [smem:[#allocation6 + $0x14]]
          %s771 = sld [smem:[#allocation6 + $0x94]]
          %v772 = vstv %s770
          %v773 = vmul.f32 %v772, %v420
          %v774 = vmul.f32 %v772, %v421
          %v775 = vstv %s771
          %v776 = vmul.f32 %v775, %v432
          %v777 = vmul.f32 %v775, %v433
          %v778 = vadd.f32 %v773, %v776
          %v779 = vadd.f32 %v774, %v777
          %v780 = vadd.f32 %v756, %v778
          %v781 = vadd.f32 %v757, %v779
          %v782 = vadd.f32 %v780, %v768
          %v783 = vadd.f32 %v781, %v769
          %v786 = vrot.slane %v783, 7
          %v787 = vsel %vm218, %v782, %v786
          %788 = vrot.lane.b32.xlu0 %v787, 48
          %v789 = vpop.permute.xlu0 %788
          %v790 = vrot.slane %v789, 7
          %v791 = vsel %vm539, %v790, %v789
          %793 = vst.msk [vmem:[#allocation4] sm:$0x7] %vm544, %v791
          %v794 = vld [vmem:[#allocation4] sm:$0x7]
          %vm795 = vcmp.ge.s32.totalorder %v267, 16
          %vm796 = vcmp.ge.s32.totalorder %v268, 16
          %v798 = vperm.slane %v794, 0
          %v799 = vperm.slane %v794, 1
          %v800 = vperm.slane %v794, 2
          %801 = vrot.lane.b32.xlu0 %v798, 96
          %v802 = vpop.permute.xlu0 %801
          %803 = vrot.lane.b32.xlu0 %v799, 96
          %v804 = vpop.permute.xlu0 %803
          %805 = vrot.lane.b32.xlu0 %v800, 96
          %v806 = vpop.permute.xlu0 %805
          %vm807 = vcmask 785408
          %v808 = vsel %vm807, %v802, %v804
          %v809 = vsel %vm807, %v804, %v806
          %v812 = vsel %vm795, %v808, 0.0
          %v813 = vsel %vm796, %v809, 0.0
          %v814 = vadd.f32 %v556, %v812
          %v815 = vadd.f32 %v557, %v813
          %s816 = sld [smem:[#allocation6 + $0x15]]
          %s817 = sld [smem:[#allocation6 + $0x95]]
          %v818 = vstv %s816
          %v819 = vmul.f32 %v818, %v280
          %v820 = vmul.f32 %v818, %v281
          %v821 = vstv %s817
          %v822 = vmul.f32 %v821, %v287
          %v823 = vmul.f32 %v821, %v288
          %v824 = vadd.f32 %v819, %v822
          %v825 = vadd.f32 %v820, %v823
          %v826 = vadd.f32 %v824, 0.0
          %v827 = vadd.f32 %v825, 0.0
          %s828 = sld [smem:[#allocation6 + $0x16]]
          %s829 = sld [smem:[#allocation6 + $0x96]]
          %v830 = vstv %s828
          %v831 = vmul.f32 %v830, %v308
          %v832 = vmul.f32 %v830, %v309
          %v833 = vstv %s829
          %v834 = vmul.f32 %v833, %v324
          %v835 = vmul.f32 %v833, %v325
          %v836 = vadd.f32 %v831, %v834
          %v837 = vadd.f32 %v832, %v835
          %v838 = vadd.f32 %v836, 0.0
          %v839 = vadd.f32 %v837, 0.0
          %s840 = sld [smem:[#allocation6 + $0x17]]
          %s841 = sld [smem:[#allocation6 + $0x97]]
          %v842 = vstv %s840
          %v843 = vmul.f32 %v842, %v339
          %v844 = vmul.f32 %v842, %v340
          %v845 = vstv %s841
          %v846 = vmul.f32 %v845, %v351
          %v847 = vmul.f32 %v845, %v352
          %v848 = vadd.f32 %v843, %v846
          %v849 = vadd.f32 %v844, %v847
          %v850 = vadd.f32 %v826, %v848
          %v851 = vadd.f32 %v827, %v849
          %s852 = sld [smem:[#allocation6 + $0x18]]
          %s853 = sld [smem:[#allocation6 + $0x98]]
          %v854 = vstv %s852
          %v855 = vmul.f32 %v854, %v289
          %v856 = vstv %s853
          %v857 = vmul.f32 %v856, %v290
          %v858 = vadd.f32 %v855, %v857
          %v860 = vperm.slane %v858, 0
          %v861 = vperm.slane %v858, 1
          %v862 = vperm.slane %v858, 2
          %863 = vrot.lane.b32.xlu0 %v860, 125
          %v864 = vpop.permute.xlu0 %863
          %865 = vrot.lane.b32.xlu0 %v861, 125
          %v866 = vpop.permute.xlu0 %865
          %867 = vrot.lane.b32.xlu0 %v862, 125
          %v868 = vpop.permute.xlu0 %867
          %v869 = vsel %vm487, %v864, %v866
          %v870 = vsel %vm487, %v866, %v868
          %v873 = vadd.f32 %v838, %v869
          %v874 = vadd.f32 %v839, %v870
          %s875 = sld [smem:[#allocation6 + $0x19]]
          %s876 = sld [smem:[#allocation6 + $0x99]]
          %v877 = vstv %s875
          %v878 = vmul.f32 %v877, %v366
          %v879 = vmul.f32 %v877, %v367
          %v880 = vstv %s876
          %v881 = vmul.f32 %v880, %v378
          %v882 = vmul.f32 %v880, %v379
          %v883 = vadd.f32 %v878, %v881
          %v884 = vadd.f32 %v879, %v882
          %v885 = vadd.f32 %v850, %v883
          %v886 = vadd.f32 %v851, %v884
          %s887 = sld [smem:[#allocation6 + $0x1a]]
          %s888 = sld [smem:[#allocation6 + $0x9a]]
          %v889 = vstv %s887
          %v890 = vmul.f32 %v889, %v393
          %v891 = vmul.f32 %v889, %v394
          %v892 = vstv %s888
          %v893 = vmul.f32 %v892, %v405
          %v894 = vmul.f32 %v892, %v406
          %v895 = vadd.f32 %v890, %v893
          %v896 = vadd.f32 %v891, %v894
          %v897 = vadd.f32 %v873, %v895
          %v898 = vadd.f32 %v874, %v896
          %s899 = sld [smem:[#allocation6 + $0x1b]]
          %s900 = sld [smem:[#allocation6 + $0x9b]]
          %v901 = vstv %s899
          %v902 = vmul.f32 %v901, %v420
          %v903 = vmul.f32 %v901, %v421
          %v904 = vstv %s900
          %v905 = vmul.f32 %v904, %v432
          %v906 = vmul.f32 %v904, %v433
          %v907 = vadd.f32 %v902, %v905
          %v908 = vadd.f32 %v903, %v906
          %v909 = vadd.f32 %v885, %v907
          %v910 = vadd.f32 %v886, %v908
          %v911 = vadd.f32 %v909, %v897
          %v912 = vadd.f32 %v910, %v898
          %v913 = vadd.f32 %v685, %v911
          %v914 = vadd.f32 %v686, %v912
          %s915 = sld [smem:[#allocation6 + $0x1c]]
          %s916 = sld [smem:[#allocation6 + $0x9c]]
          %v917 = vstv %s915
          %v918 = vmul.f32 %v917, %v280
          %v919 = vmul.f32 %v917, %v281
          %v920 = vstv %s916
          %v921 = vmul.f32 %v920, %v287
          %v922 = vmul.f32 %v920, %v288
          %v923 = vadd.f32 %v918, %v921
          %v924 = vadd.f32 %v919, %v922
          %v925 = vadd.f32 %v923, 0.0
          %v926 = vadd.f32 %v924, 0.0
          %s927 = sld [smem:[#allocation6 + $0x1d]]
          %s928 = sld [smem:[#allocation6 + $0x9d]]
          %v929 = vstv %s927
          %v930 = vmul.f32 %v929, %v308
          %v931 = vmul.f32 %v929, %v309
          %v932 = vstv %s928
          %v933 = vmul.f32 %v932, %v324
          %v934 = vmul.f32 %v932, %v325
          %v935 = vadd.f32 %v930, %v933
          %v936 = vadd.f32 %v931, %v934
          %v937 = vadd.f32 %v935, 0.0
          %v938 = vadd.f32 %v936, 0.0
          %s939 = sld [smem:[#allocation6 + $0x1e]]
          %s940 = sld [smem:[#allocation6 + $0x9e]]
          %v941 = vstv %s939
          %v942 = vmul.f32 %v941, %v339
          %v943 = vmul.f32 %v941, %v340
          %v944 = vstv %s940
          %v945 = vmul.f32 %v944, %v351
          %v946 = vmul.f32 %v944, %v352
          %v947 = vadd.f32 %v942, %v945
          %v948 = vadd.f32 %v943, %v946
          %v949 = vadd.f32 %v925, %v947
          %v950 = vadd.f32 %v926, %v948
          %s951 = sld [smem:[#allocation6 + $0x1f]]
          %s952 = sld [smem:[#allocation6 + $0x9f]]
          %v953 = vstv %s951
          %v954 = vmul.f32 %v953, %v289
          %v955 = vstv %s952
          %v956 = vmul.f32 %v955, %v290
          %v957 = vadd.f32 %v954, %v956
          %v959 = vperm.slane %v957, 0
          %v960 = vperm.slane %v957, 1
          %v961 = vperm.slane %v957, 2
          %962 = vrot.lane.b32.xlu0 %v959, 125
          %v963 = vpop.permute.xlu0 %962
          %964 = vrot.lane.b32.xlu0 %v960, 125
          %v965 = vpop.permute.xlu0 %964
          %966 = vrot.lane.b32.xlu0 %v961, 125
          %v967 = vpop.permute.xlu0 %966
          %v968 = vsel %vm487, %v963, %v965
          %v969 = vsel %vm487, %v965, %v967
          %v972 = vadd.f32 %v937, %v968
          %v973 = vadd.f32 %v938, %v969
          %s974 = sld [smem:[#allocation6 + $0x20]]
          %s975 = sld [smem:[#allocation6 + $0xa0]]
          %v976 = vstv %s974
          %v977 = vmul.f32 %v976, %v366
          %v978 = vmul.f32 %v976, %v367
          %v979 = vstv %s975
          %v980 = vmul.f32 %v979, %v378
          %v981 = vmul.f32 %v979, %v379
          %v982 = vadd.f32 %v977, %v980
          %v983 = vadd.f32 %v978, %v981
          %v984 = vadd.f32 %v949, %v982
          %v985 = vadd.f32 %v950, %v983
          %s986 = sld [smem:[#allocation6 + $0x21]]
          %s987 = sld [smem:[#allocation6 + $0xa1]]
          %v988 = vstv %s986
          %v989 = vmul.f32 %v988, %v393
          %v990 = vmul.f32 %v988, %v394
          %v991 = vstv %s987
          %v992 = vmul.f32 %v991, %v405
          %v993 = vmul.f32 %v991, %v406
          %v994 = vadd.f32 %v989, %v992
          %v995 = vadd.f32 %v990, %v993
          %v996 = vadd.f32 %v972, %v994
          %v997 = vadd.f32 %v973, %v995
          %s998 = sld [smem:[#allocation6 + $0x22]]
          %s999 = sld [smem:[#allocation6 + $0xa2]]
          %v1000 = vstv %s998
          %v1001 = vmul.f32 %v1000, %v420
          %v1002 = vmul.f32 %v1000, %v421
          %v1003 = vstv %s999
          %v1004 = vmul.f32 %v1003, %v432
          %v1005 = vmul.f32 %v1003, %v433
          %v1006 = vadd.f32 %v1001, %v1004
          %v1007 = vadd.f32 %v1002, %v1005
          %v1008 = vadd.f32 %v984, %v1006
          %v1009 = vadd.f32 %v985, %v1007
          %v1010 = vadd.f32 %v1008, %v996
          %v1011 = vadd.f32 %v1009, %v997
          %v1014 = vrot.slane %v1011, 7
          %v1015 = vsel %vm218, %v1010, %v1014
          %1016 = vrot.lane.b32.xlu0 %v1015, 48
          %v1017 = vpop.permute.xlu0 %1016
          %v1018 = vrot.slane %v1017, 7
          %v1019 = vsel %vm539, %v1018, %v1017
          %1021 = vst.msk [vmem:[#allocation4] sm:$0x7] %vm544, %v1019
          %v1022 = vld [vmem:[#allocation4] sm:$0x7]
          %vm1023 = vcmp.lt.s32.totalorder %v267, 240
          %vm1024 = vcmp.lt.s32.totalorder %v268, 240
          %v1026 = vperm.slane %v1022, 0
          %v1027 = vperm.slane %v1022, 1
          %v1028 = vperm.slane %v1022, 2
          %1029 = vrot.lane.b32.xlu0 %v1026, 64
          %v1030 = vpop.permute.xlu0 %1029
          %1031 = vrot.lane.b32.xlu0 %v1027, 64
          %v1032 = vpop.permute.xlu0 %1031
          %1033 = vrot.lane.b32.xlu0 %v1028, 64
          %v1034 = vpop.permute.xlu0 %1033
          %vm1035 = vcmask 523264
          %v1036 = vsel %vm1035, %v1030, %v1032
          %v1037 = vsel %vm1035, %v1032, %v1034
          %v1040 = vsel %vm1023, %v1036, 0.0
          %v1041 = vsel %vm1024, %v1037, 0.0
          %v1042 = vadd.f32 %v814, %v1040
          %v1043 = vadd.f32 %v815, %v1041
          %s1044 = sld [smem:[#allocation6 + $0x23]]
          %s1045 = sld [smem:[#allocation6 + $0xa3]]
          %v1046 = vstv %s1044
          %v1047 = vmul.f32 %v1046, %v280
          %v1048 = vmul.f32 %v1046, %v281
          %v1049 = vstv %s1045
          %v1050 = vmul.f32 %v1049, %v287
          %v1051 = vmul.f32 %v1049, %v288
          %v1052 = vadd.f32 %v1047, %v1050
          %v1053 = vadd.f32 %v1048, %v1051
          %v1054 = vadd.f32 %v1052, 0.0
          %v1055 = vadd.f32 %v1053, 0.0
          %s1056 = sld [smem:[#allocation6 + $0x24]]
          %s1057 = sld [smem:[#allocation6 + $0xa4]]
          %v1058 = vstv %s1056
          %v1059 = vmul.f32 %v1058, %v308
          %v1060 = vmul.f32 %v1058, %v309
          %v1061 = vstv %s1057
          %v1062 = vmul.f32 %v1061, %v324
          %v1063 = vmul.f32 %v1061, %v325
          %v1064 = vadd.f32 %v1059, %v1062
          %v1065 = vadd.f32 %v1060, %v1063
          %v1066 = vadd.f32 %v1064, 0.0
          %v1067 = vadd.f32 %v1065, 0.0
          %s1068 = sld [smem:[#allocation6 + $0x25]]
          %s1069 = sld [smem:[#allocation6 + $0xa5]]
          %v1070 = vstv %s1068
          %v1071 = vmul.f32 %v1070, %v339
          %v1072 = vmul.f32 %v1070, %v340
          %v1073 = vstv %s1069
          %v1074 = vmul.f32 %v1073, %v351
          %v1075 = vmul.f32 %v1073, %v352
          %v1076 = vadd.f32 %v1071, %v1074
          %v1077 = vadd.f32 %v1072, %v1075
          %v1078 = vadd.f32 %v1054, %v1076
          %v1079 = vadd.f32 %v1055, %v1077
          %s1080 = sld [smem:[#allocation6 + $0x26]]
          %s1081 = sld [smem:[#allocation6 + $0xa6]]
          %v1082 = vstv %s1080
          %v1083 = vmul.f32 %v1082, %v289
          %v1084 = vstv %s1081
          %v1085 = vmul.f32 %v1084, %v290
          %v1086 = vadd.f32 %v1083, %v1085
          %v1088 = vperm.slane %v1086, 0
          %v1089 = vperm.slane %v1086, 1
          %v1090 = vperm.slane %v1086, 2
          %1091 = vrot.lane.b32.xlu0 %v1088, 125
          %v1092 = vpop.permute.xlu0 %1091
          %1093 = vrot.lane.b32.xlu0 %v1089, 125
          %v1094 = vpop.permute.xlu0 %1093
          %1095 = vrot.lane.b32.xlu0 %v1090, 125
          %v1096 = vpop.permute.xlu0 %1095
          %v1097 = vsel %vm487, %v1092, %v1094
          %v1098 = vsel %vm487, %v1094, %v1096
          %v1101 = vadd.f32 %v1066, %v1097
          %v1102 = vadd.f32 %v1067, %v1098
          %s1103 = sld [smem:[#allocation6 + $0x27]]
          %s1104 = sld [smem:[#allocation6 + $0xa7]]
          %v1105 = vstv %s1103
          %v1106 = vmul.f32 %v1105, %v366
          %v1107 = vmul.f32 %v1105, %v367
          %v1108 = vstv %s1104
          %v1109 = vmul.f32 %v1108, %v378
          %v1110 = vmul.f32 %v1108, %v379
          %v1111 = vadd.f32 %v1106, %v1109
          %v1112 = vadd.f32 %v1107, %v1110
          %v1113 = vadd.f32 %v1078, %v1111
          %v1114 = vadd.f32 %v1079, %v1112
          %s1115 = sld [smem:[#allocation6 + $0x28]]
          %s1116 = sld [smem:[#allocation6 + $0xa8]]
          %v1117 = vstv %s1115
          %v1118 = vmul.f32 %v1117, %v393
          %v1119 = vmul.f32 %v1117, %v394
          %v1120 = vstv %s1116
          %v1121 = vmul.f32 %v1120, %v405
          %v1122 = vmul.f32 %v1120, %v406
          %v1123 = vadd.f32 %v1118, %v1121
          %v1124 = vadd.f32 %v1119, %v1122
          %v1125 = vadd.f32 %v1101, %v1123
          %v1126 = vadd.f32 %v1102, %v1124
          %s1127 = sld [smem:[#allocation6 + $0x29]]
          %s1128 = sld [smem:[#allocation6 + $0xa9]]
          %v1129 = vstv %s1127
          %v1130 = vmul.f32 %v1129, %v420
          %v1131 = vmul.f32 %v1129, %v421
          %v1132 = vstv %s1128
          %v1133 = vmul.f32 %v1132, %v432
          %v1134 = vmul.f32 %v1132, %v433
          %v1135 = vadd.f32 %v1130, %v1133
          %v1136 = vadd.f32 %v1131, %v1134
          %v1137 = vadd.f32 %v1113, %v1135
          %v1138 = vadd.f32 %v1114, %v1136
          %v1139 = vadd.f32 %v1137, %v1125
          %v1140 = vadd.f32 %v1138, %v1126
          %v1143 = vrot.slane %v1140, 7
          %v1144 = vsel %vm218, %v1139, %v1143
          %1145 = vrot.lane.b32.xlu0 %v1144, 48
          %v1146 = vpop.permute.xlu0 %1145
          %v1147 = vrot.slane %v1146, 7
          %v1148 = vsel %vm539, %v1147, %v1146
          %1150 = vst.msk [vmem:[#allocation5] sm:$0x7] %vm544, %v1148
          %v1151 = vld [vmem:[#allocation5] sm:$0x7]
          %vm1152 = vcmp.lt.s32.totalorder %v267, 224
          %vm1153 = vcmp.lt.s32.totalorder %v268, 224
          %v1155 = vperm.slane %v1151, 0
          %v1156 = vperm.slane %v1151, 1
          %v1157 = vperm.slane %v1151, 2
          %1158 = vrot.lane.b32.xlu0 %v1155, 48
          %v1159 = vpop.permute.xlu0 %1158
          %1160 = vrot.lane.b32.xlu0 %v1156, 48
          %v1161 = vpop.permute.xlu0 %1160
          %1162 = vrot.lane.b32.xlu0 %v1157, 48
          %v1163 = vpop.permute.xlu0 %1162
          %v1164 = vsel %vm539, %v1159, %v1161
          %v1165 = vsel %vm539, %v1161, %v1163
          %v1168 = vsel %vm1152, %v1164, 0.0
          %v1169 = vsel %vm1153, %v1165, 0.0
          %v1170 = vadd.f32 %v913, %v1168
          %v1171 = vadd.f32 %v914, %v1169
          %s1172 = sld [smem:[#allocation6 + $0x2a]]
          %s1173 = sld [smem:[#allocation6 + $0xaa]]
          %v1174 = vstv %s1172
          %v1175 = vmul.f32 %v1174, %v280
          %v1176 = vmul.f32 %v1174, %v281
          %v1177 = vstv %s1173
          %v1178 = vmul.f32 %v1177, %v287
          %v1179 = vmul.f32 %v1177, %v288
          %v1180 = vadd.f32 %v1175, %v1178
          %v1181 = vadd.f32 %v1176, %v1179
          %v1182 = vadd.f32 %v1180, 0.0
          %v1183 = vadd.f32 %v1181, 0.0
          %s1184 = sld [smem:[#allocation6 + $0x2b]]
          %s1185 = sld [smem:[#allocation6 + $0xab]]
          %v1186 = vstv %s1184
          %v1187 = vmul.f32 %v1186, %v308
          %v1188 = vmul.f32 %v1186, %v309
          %v1189 = vstv %s1185
          %v1190 = vmul.f32 %v1189, %v324
          %v1191 = vmul.f32 %v1189, %v325
          %v1192 = vadd.f32 %v1187, %v1190
          %v1193 = vadd.f32 %v1188, %v1191
          %v1194 = vadd.f32 %v1192, 0.0
          %v1195 = vadd.f32 %v1193, 0.0
          %s1196 = sld [smem:[#allocation6 + $0x2c]]
          %s1197 = sld [smem:[#allocation6 + $0xac]]
          %v1198 = vstv %s1196
          %v1199 = vmul.f32 %v1198, %v339
          %v1200 = vmul.f32 %v1198, %v340
          %v1201 = vstv %s1197
          %v1202 = vmul.f32 %v1201, %v351
          %v1203 = vmul.f32 %v1201, %v352
          %v1204 = vadd.f32 %v1199, %v1202
          %v1205 = vadd.f32 %v1200, %v1203
          %v1206 = vadd.f32 %v1182, %v1204
          %v1207 = vadd.f32 %v1183, %v1205
          %s1208 = sld [smem:[#allocation6 + $0x2d]]
          %s1209 = sld [smem:[#allocation6 + $0xad]]
          %v1210 = vstv %s1208
          %v1211 = vmul.f32 %v1210, %v289
          %v1212 = vstv %s1209
          %v1213 = vmul.f32 %v1212, %v290
          %v1214 = vadd.f32 %v1211, %v1213
          %v1216 = vperm.slane %v1214, 0
          %v1217 = vperm.slane %v1214, 1
          %v1218 = vperm.slane %v1214, 2
          %1219 = vrot.lane.b32.xlu0 %v1216, 125
          %v1220 = vpop.permute.xlu0 %1219
          %1221 = vrot.lane.b32.xlu0 %v1217, 125
          %v1222 = vpop.permute.xlu0 %1221
          %1223 = vrot.lane.b32.xlu0 %v1218, 125
          %v1224 = vpop.permute.xlu0 %1223
          %v1225 = vsel %vm487, %v1220, %v1222
          %v1226 = vsel %vm487, %v1222, %v1224
          %v1229 = vadd.f32 %v1194, %v1225
          %v1230 = vadd.f32 %v1195, %v1226
          %s1231 = sld [smem:[#allocation6 + $0x2e]]
          %s1232 = sld [smem:[#allocation6 + $0xae]]
          %v1233 = vstv %s1231
          %v1234 = vmul.f32 %v1233, %v366
          %v1235 = vmul.f32 %v1233, %v367
          %v1236 = vstv %s1232
          %v1237 = vmul.f32 %v1236, %v378
          %v1238 = vmul.f32 %v1236, %v379
          %v1239 = vadd.f32 %v1234, %v1237
          %v1240 = vadd.f32 %v1235, %v1238
          %v1241 = vadd.f32 %v1206, %v1239
          %v1242 = vadd.f32 %v1207, %v1240
          %s1243 = sld [smem:[#allocation6 + $0x2f]]
          %s1244 = sld [smem:[#allocation6 + $0xaf]]
          %v1245 = vstv %s1243
          %v1246 = vmul.f32 %v1245, %v393
          %v1247 = vmul.f32 %v1245, %v394
          %v1248 = vstv %s1244
          %v1249 = vmul.f32 %v1248, %v405
          %v1250 = vmul.f32 %v1248, %v406
          %v1251 = vadd.f32 %v1246, %v1249
          %v1252 = vadd.f32 %v1247, %v1250
          %v1253 = vadd.f32 %v1229, %v1251
          %v1254 = vadd.f32 %v1230, %v1252
          %s1255 = sld [smem:[#allocation6 + $0x30]]
          %s1256 = sld [smem:[#allocation6 + $0xb0]]
          %v1257 = vstv %s1255
          %v1258 = vmul.f32 %v1257, %v420
          %v1259 = vmul.f32 %v1257, %v421
          %v1260 = vstv %s1256
          %v1261 = vmul.f32 %v1260, %v432
          %v1262 = vmul.f32 %v1260, %v433
          %v1263 = vadd.f32 %v1258, %v1261
          %v1264 = vadd.f32 %v1259, %v1262
          %v1265 = vadd.f32 %v1241, %v1263
          %v1266 = vadd.f32 %v1242, %v1264
          %v1267 = vadd.f32 %v1265, %v1253
          %v1268 = vadd.f32 %v1266, %v1254
          %v1271 = vrot.slane %v1268, 7
          %v1272 = vsel %vm218, %v1267, %v1271
          %1273 = vrot.lane.b32.xlu0 %v1272, 48
          %v1274 = vpop.permute.xlu0 %1273
          %v1275 = vrot.slane %v1274, 7
          %v1276 = vsel %vm539, %v1275, %v1274
          %1278 = vst.msk [vmem:[#allocation4] sm:$0x7] %vm544, %v1276
          %v1279 = vld [vmem:[#allocation4] sm:$0x7]
          %vm1280 = vcmp.lt.s32.totalorder %v267, 208
          %vm1281 = vcmp.lt.s32.totalorder %v268, 208
          %v1283 = vperm.slane %v1279, 0
          %v1284 = vperm.slane %v1279, 1
          %v1285 = vperm.slane %v1279, 2
          %1286 = vrot.lane.b32.xlu0 %v1283, 32
          %v1287 = vpop.permute.xlu0 %1286
          %1288 = vrot.lane.b32.xlu0 %v1284, 32
          %v1289 = vpop.permute.xlu0 %1288
          %1290 = vrot.lane.b32.xlu0 %v1285, 32
          %v1291 = vpop.permute.xlu0 %1290
          %vm1292 = vcmask 261120
          %v1293 = vsel %vm1292, %v1287, %v1289
          %v1294 = vsel %vm1292, %v1289, %v1291
          %v1297 = vsel %vm1280, %v1293, 0.0
          %v1298 = vsel %vm1281, %v1294, 0.0
          %v1299 = vadd.f32 %v1042, %v1297
          %v1300 = vadd.f32 %v1043, %v1298
          %v1301 = vadd.f32 %v1299, %v1170
          %v1302 = vadd.f32 %v1300, %v1171
          %v1303 = vxor.u32 %v1301, 2147483648
          %v1304 = vxor.u32 %v1302, 2147483648
          %v1305 = vmul.f32 %v1303, 1.442695
          %v1306 = vpow.pop %v1305
          %v1307 = vmul.f32 %v1304, 1.442695
          %v1308 = vpow.pop %v1307
          %v1309 = vadd.f32 %v1306, 1.0
          %v1310 = vadd.f32 %v1308, 1.0
          %v1311 = vrcp.pop %v1309
          %v1312 = vmul.f32 %v1309, %v1311
          %v1313 = vsub.f32 1.0, %v1312
          %v1314 = vmul.f32 %v1311, %v1313
          %v1315 = vadd.f32 %v1311, %v1314
          %vm1316 = vweird.f32 %v1309
          %vm1317 = vweird.f32 %v1311
          %vm1318 = vmor %vm1316, %vm1317
          %v1319 = vsel %vm1318, %v1311, %v1315
          %v1320 = vand.u32 2147483647, %v1309
          %vm1321 = vcmp.eq.f32.partialorder %v1320, 8.507059e+37
          %v1322 = vand.u32 %v1309, 2147483648
          %v1323 = vor.u32 1.1754944e-38, %v1322
          %v1324 = vsel %vm1321, %v1323, %v1319
          %v1325 = vmul.f32 1.0, %v1324
          %v1326 = vrcp.pop %v1310
          %v1327 = vmul.f32 %v1310, %v1326
          %v1328 = vsub.f32 1.0, %v1327
          %v1329 = vmul.f32 %v1326, %v1328
          %v1330 = vadd.f32 %v1326, %v1329
          %vm1331 = vweird.f32 %v1310
          %vm1332 = vweird.f32 %v1326
          %vm1333 = vmor %vm1331, %vm1332
          %v1334 = vsel %vm1333, %v1326, %v1330
          %v1335 = vand.u32 2147483647, %v1310
          %vm1336 = vcmp.eq.f32.partialorder %v1335, 8.507059e+37
          %v1337 = vand.u32 %v1310, 2147483648
          %v1338 = vor.u32 1.1754944e-38, %v1337
          %v1339 = vsel %vm1336, %v1338, %v1334
          %v1340 = vmul.f32 1.0, %v1339
          %v1343 = vrot.slane %v1340, 7
          %v1344 = vsel %vm218, %v1325, %v1343
          %vm1346 = vcmp.ge.s32.totalorder %v227, 0
          %vm1347 = vcmp.lt.s32.totalorder %v227, 256
          %vm1348 = vmand %vm1346, %vm1347
          %1349 = vst.msk [vmem:[%s181] sm:$0x3] %vm1348, %v1344
        $region40: #{spatial_attention.1} parent=27 // pred_fallthru
          _
        %p1350 = scmp.lt.s32.totalorder %s18, 1
        %s1351 = scalar_select %p1350, %s18, 1
        %s1352 = smul.addr %s1351, 2
        %s1353 = scalar_lea.vmem %s2, %s1352
        // Predicated region
        $region41: #{spatial_attention.1} parent=27 // pred_check
          %p1354 = pneg %p93
        $region42: #{spatial_attention.1} parent=27 // pred_check_branch
          %1356 = sbr.rel (%p1354) target = $region44
        $region43: #{spatial_attention.1} parent=27 // pred_region
          _
        $region44: #{spatial_attention.1} parent=27 // pred_fallthru
          _
      $region28: #{spatial_attention.1} parent=5 // pred_fallthru
        _
      %p1357 = scmp.le.s32.totalorder 2, %s9
      // Predicated region
      $region45: #{spatial_attention.1} parent=5 // pred_check
        %p1358 = pneg %p1357
      $region46: #{spatial_attention.1} parent=5 // pred_check_branch
        %1360 = sbr.rel (%p1358) target = $region48
      $region47: #{spatial_attention.1} parent=5 // pred_region
        %s1361 = ssub.s32 %s9, 2
        // Predicated region
        $region49: #{spatial_attention.1} parent=47 // pred_check
          %p1362 = pneg %p99
        $region50: #{spatial_attention.1} parent=47 // pred_check_branch
          %1364 = sbr.rel (%p1362) target = $region52
        $region51: #{spatial_attention.1} parent=47 // pred_region
          %p1365 = scmp.lt.s32.totalorder %s20, 1
          %s1366 = scalar_select %p1365, %s20, 1
          %s1367 = smul.addr %s1366, 2
          %s1368 = scalar_lea.vmem %s2, %s1367
        $region52: #{spatial_attention.1} parent=47 // pred_fallthru
          _
      $region48: #{spatial_attention.1} parent=5 // pred_fallthru
        _
    $region6: #{spatial_attention.1} parent=1 // loop_footer
      %s13 = sadd.s32 1, %s9
    $region7: #{spatial_attention.1} parent=1 // loop_footer_branch
      %8 = sbr.rel target = $region3
    $region8: #{spatial_attention.1} parent=1 // loop_exit
      _
    %1369 = vsyncpa [#allocation7], 1
    %s1370 = scalar_lea.sflag [#allocation7], 1
    %1371 = vsyncpa %s1370, 1

</llo_original>
